<compile_context>
chip_gen: v7x
topology: tpu7x:2x2x1
jax: 0.10.0
libtpu: 0.0.40
codegen_flags: <defaults>
</compile_context>

<pallas_src>
import functools

import jax
import jax.numpy as jnp
from jax.experimental import pallas as pl
from jax.experimental.pallas import tpu as pltpu

_LANE = 128


def _round_up(x, m):
    return ((x + m - 1) // m) * m


# ----------------------------- Pallas kernel -------------------------------

def _conv_bn_relu_kernel(p_ref, w_ref, shift_ref, o_ref):
    # p_ref:     (tm, Kp)  bf16 im2col patch tile
    # w_ref:     (Kp, N)   bf16 conv weights with BN scale folded in
    # shift_ref: (1, N)    f32 folded BN shift
    # o_ref:     (tm, N)   bf16 output tile
    y = jnp.dot(p_ref[...], w_ref[...], preferred_element_type=jnp.float32)
    y = y + shift_ref[...]
    o_ref[...] = jnp.maximum(y, 0.0).astype(o_ref.dtype)


def _choose_tm(m):
    """Aligned M tile: big tiles, <1 tile of pad, single block for tiny M."""
    m16 = _round_up(max(m, 16), 16)
    if m16 >= 1024:
        return 512          # >=2 parallel blocks, each with real work
    if m16 >= 512:
        return 256          # 2+ blocks of 256 rows (feeds both v7x TCs)
    return m16              # single block, pad only to sublane alignment


def _fused_conv_bn_relu_matmul(patches, w_mat, shift):
    """patches: [M, Kp] bf16, w_mat: [Kp, Np] bf16, shift: [1, Np] f32 -> [Mp, Np] bf16."""
    M, K = patches.shape
    _, N = w_mat.shape
    assert K % _LANE == 0 and N % _LANE == 0

    tm = _choose_tm(M)
    m_pad = _round_up(M, tm)
    if m_pad != M:
        patches = jnp.pad(patches, ((0, m_pad - M), (0, 0)))

    out = pl.pallas_call(
        _conv_bn_relu_kernel,
        out_shape=jax.ShapeDtypeStruct((m_pad, N), jnp.bfloat16),
        grid_spec=pltpu.PrefetchScalarGridSpec(
            num_scalar_prefetch=0,
            grid=(m_pad // tm,),
            in_specs=[
                pl.BlockSpec((tm, K), lambda i: (i, 0)),
                pl.BlockSpec((K, N), lambda i: (0, 0)),
                pl.BlockSpec((1, N), lambda i: (0, 0)),
            ],
            out_specs=pl.BlockSpec((tm, N), lambda i: (i, 0)),
        ),
        compiler_params=pltpu.CompilerParams(
            dimension_semantics=("parallel",)),
    )(patches, w_mat, shift)
    return out


# ------------------------------- glue (JAX) --------------------------------

def _im2col_nhwc(x, k, stride, pad):
    """x: [B, H, W, C] -> [B, Ho, Wo, k*k*C], patch order (dh, dw, c)."""
    B, H, W, C = x.shape
    xp = jnp.pad(x, ((0, 0), (pad, pad), (pad, pad), (0, 0)))
    Ho = (H + 2 * pad - k) // stride + 1
    Wo = (W + 2 * pad - k) // stride + 1
    cols = []
    for dh in range(k):
        for dw in range(k):
            cols.append(xp[:, dh:dh + stride * Ho:stride,
                           dw:dw + stride * Wo:stride, :])
    return jnp.concatenate(cols, axis=-1), Ho, Wo


def conv_bn_relu_nhwc(x_nhwc, params, *, stride):
    """One synthetic backbone stage: conv3x3(pad=1) -> BN(eval) -> ReLU.

    NHWC bf16 in / NHWC bf16 out (f32 MXU accumulation inside the kernel).
    """
    w = params["weight"]            # (Cout, Cin, 3, 3) — PyTorch conv weight shape
    gamma = params["bn_gamma"]
    beta = params["bn_beta"]
    mean = params["bn_mean"]
    var = params["bn_var"]
    eps = 1e-5

    cout, cin, kh, kw = w.shape
    K = kh * kw * cin

    # Fold BN scale into the weight matrix (once, on tiny parameters).
    scale = gamma / jnp.sqrt(var + eps)                       # (Cout,)
    shift = beta - mean * scale                               # (Cout,)
    # (Cout, Cin, kh, kw) -> (kh, kw, Cin, Cout) -> (K, Cout), matching the
    # (dh, dw, c) patch ordering of _im2col_nhwc.
    w_mat = jnp.transpose(w, (2, 3, 1, 0)).reshape(K, cout).astype(jnp.float32)
    w_mat = w_mat * scale[None, :].astype(jnp.float32)

    # Build the 9x-expanded patch intermediate directly in bf16 (2 B/elem).
    x_bf = x_nhwc.astype(jnp.bfloat16)
    patches, Ho, Wo = _im2col_nhwc(x_bf, k=kh, stride=stride, pad=1)
    B = x_bf.shape[0]
    M = B * Ho * Wo
    patches_2d = patches.reshape(M, K)

    # Pad K and N to lane width (zeros are matmul-neutral; sliced off after).
    k_pad = _round_up(K, _LANE)
    n_pad = _round_up(cout, _LANE)
    if k_pad != K:
        patches_2d = jnp.pad(patches_2d, ((0, 0), (0, k_pad - K)))
        w_mat = jnp.pad(w_mat, ((0, k_pad - K), (0, 0)))
    if n_pad != cout:
        w_mat = jnp.pad(w_mat, ((0, 0), (0, n_pad - cout)))
        shift = jnp.pad(shift, (0, n_pad - cout))

    w_bf16 = w_mat.astype(jnp.bfloat16)
    shift_2d = shift.reshape(1, n_pad).astype(jnp.float32)

    out_2d = _fused_conv_bn_relu_matmul(patches_2d, w_bf16, shift_2d)
    out = out_2d[:M, :cout].reshape(B, Ho, Wo, cout)
    return out


# --------------------------- FeatureExtractor -------------------------------

class FeatureExtractor:
    """Synthetic backbone + feature-dict extraction (Pallas compute)."""

    # (name, in_channels, out_channels, stride)
    _STAGES = (
        ("layer1", 3, 16, 1),
        ("layer2", 16, 32, 2),
        ("layer3", 32, 64, 2),
    )

    def __init__(self, layer_names=("layer2", "layer3"), seed=0):
        self.layer_names = tuple(layer_names)
        key = jax.random.PRNGKey(seed)
        self.params = {}
        for name, cin, cout, _ in self._STAGES:
            key, kw_, kg, kb, km, kv = jax.random.split(key, 6)
            self.params[name] = {
                "weight": 0.1 * jax.random.normal(kw_, (cout, cin, 3, 3), jnp.float32),
                "bn_gamma": 1.0 + 0.1 * jax.random.normal(kg, (cout,), jnp.float32),
                "bn_beta": 0.1 * jax.random.normal(kb, (cout,), jnp.float32),
                "bn_mean": 0.1 * jax.random.normal(km, (cout,), jnp.float32),
                "bn_var": jnp.abs(jax.random.normal(kv, (cout,), jnp.float32)) + 0.5,
            }
        # TODO(synk): pretrained wide_resnet50_2 / timm weights & transforms
        # cannot be reproduced here; backbone topology & hook semantics only.

    @functools.partial(jax.jit, static_argnums=0)
    def _forward_all(self, x_nchw):
        # One layout change in; inter-stage activations stay NHWC bf16 (lane =
        # channels). Only requested hook outputs are transposed to NCHW and
        # cast back to f32 at the boundary.
        h = jnp.transpose(x_nchw, (0, 2, 3, 1))
        feats = {}
        for name, _, _, stride in self._STAGES:
            h = conv_bn_relu_nhwc(h, self.params[name], stride=stride)
            if name in self.layer_names:
                feats[name] = jnp.transpose(h, (0, 3, 1, 2)).astype(jnp.float32)
        return feats

    def forward(self, x):
        """x: [B, 3, H, W] NCHW float32 -> dict {layer_name: NCHW feature map}."""
        feats = self._forward_all(x)
        return {name: feats[name] for name in self.layer_names}

    __call__ = forward

    def get_preprocessing(self):
        # Standard ImageNet-style normalization, expressed in JAX.
        mean = jnp.array([0.485, 0.456, 0.406], jnp.float32).reshape(1, 3, 1, 1)
        std = jnp.array([0.229, 0.224, 0.225], jnp.float32).reshape(1, 3, 1, 1)
        return lambda img_nchw: (img_nchw - mean) / std


# --------------------------------- main -------------------------------------

if __name__ == "__main__":
    key = jax.random.PRNGKey(0)
    x = jax.random.normal(key, (2, 3, 16, 16), jnp.float32)  # NCHW input

    extractor = FeatureExtractor(layer_names=("layer1", "layer2", "layer3"), seed=0)
    feats = extractor(x)

    for name, f in feats.items():
        jax.block_until_ready(f)

    # sanity checks on shapes (hook-style intermediate outputs, NCHW)
    assert feats["layer1"].shape == (2, 16, 16, 16)
    assert feats["layer2"].shape == (2, 32, 8, 8)
    assert feats["layer3"].shape == (2, 64, 4, 4)
    assert all(bool(jnp.all(jnp.isfinite(f))) for f in feats.values())

    print("KERNEL_OK")
</pallas_src>

<mosaic_0001>
module attributes {stable_mosaic.version = 11 : i64} {
  func.func @_conv_bn_relu_kernel(%arg0: i32, %arg1: memref<256x128xbf16, #tpu.memory_space<vmem>>, %arg2: memref<128x128xbf16, #tpu.memory_space<vmem>>, %arg3: memref<1x128xf32, #tpu.memory_space<vmem>>, %arg4: memref<256x128xbf16, #tpu.memory_space<vmem>>) attributes {dimension_semantics = [#tpu.dimension_semantics<parallel>], iteration_bounds = array<i64: 2>, scalar_prefetch = 0 : i64, scratch_operands = 0 : i64, tpu.core_type = #tpu.core_type<tc>, window_params = [{transform_indices = @transform_0, window_bounds = array<i64: 256, 128>}, {pipeline_mode = #tpu.pipeline_mode<synchronous>, transform_indices = @transform_1, window_bounds = array<i64: 128, 128>}, {pipeline_mode = #tpu.pipeline_mode<synchronous>, transform_indices = @transform_2, window_bounds = array<i64: 1, 128>}, {transform_indices = @transform_3, window_bounds = array<i64: 256, 128>}]} {
    %c0 = arith.constant 0 : index
    %c0_0 = arith.constant 0 : index
    %0 = vector.load %arg1[%c0, %c0_0] : memref<256x128xbf16, #tpu.memory_space<vmem>>, vector<256x128xbf16>
    %c0_1 = arith.constant 0 : index
    %c0_2 = arith.constant 0 : index
    %1 = vector.load %arg2[%c0_1, %c0_2] : memref<128x128xbf16, #tpu.memory_space<vmem>>, vector<128x128xbf16>
    %cst = arith.constant dense<0.000000e+00> : vector<256x128xf32>
    %2 = tpu.matmul %0, %1, %cst {dimension_numbers = #tpu.dot_dimension_numbers<[1], [0], [0], [1], [0, 0, 1, 1], [], []>} : vector<256x128xbf16>, vector<128x128xbf16>, vector<256x128xf32> -> vector<256x128xf32>
    %c0_3 = arith.constant 0 : index
    %c0_4 = arith.constant 0 : index
    %3 = vector.load %arg3[%c0_3, %c0_4] : memref<1x128xf32, #tpu.memory_space<vmem>>, vector<1x128xf32>
    %4 = vector.broadcast %3 : vector<1x128xf32> to vector<256x128xf32>
    %5 = arith.addf %2, %4 : vector<256x128xf32>
    %cst_5 = arith.constant 0.000000e+00 : f32
    %6 = vector.broadcast %cst_5 : f32 to vector<256x128xf32>
    %7 = arith.maximumf %5, %6 : vector<256x128xf32>
    %8 = arith.truncf %7 : vector<256x128xf32> to vector<256x128xbf16>
    %c0_6 = arith.constant 0 : index
    %c0_7 = arith.constant 0 : index
    %9 = vector.load %arg4[%c0_6, %c0_7] : memref<256x128xbf16, #tpu.memory_space<vmem>>, vector<256x128xbf16>
    tpu.vector_store %arg4[%c0_6, %c0_7], %8 {strides = array<i32>} : memref<256x128xbf16, #tpu.memory_space<vmem>>, vector<256x128xbf16>,
    return
  }
  func.func @transform_0(%arg0: i32) -> (i32, i32) {
    %c0_i32 = arith.constant 0 : i32
    %c0_i32_0 = arith.constant 0 : i32
    return %arg0, %c0_i32 : i32, i32
  }
  func.func @transform_1(%arg0: i32) -> (i32, i32) {
    %c0_i32 = arith.constant 0 : i32
    %c0_i32_0 = arith.constant 0 : i32
    %c0_i32_1 = arith.constant 0 : i32
    return %c0_i32, %c0_i32_0 : i32, i32
  }
  func.func @transform_2(%arg0: i32) -> (i32, i32) {
    %c0_i32 = arith.constant 0 : i32
    %c0_i32_0 = arith.constant 0 : i32
    %c0_i32_1 = arith.constant 0 : i32
    return %c0_i32, %c0_i32_0 : i32, i32
  }
  func.func @transform_3(%arg0: i32) -> (i32, i32) {
    %c0_i32 = arith.constant 0 : i32
    %c0_i32_0 = arith.constant 0 : i32
    return %arg0, %c0_i32 : i32, i32
  }
}

module attributes {stable_mosaic.version = 11 : i64} {
  func.func @_conv_bn_relu_kernel(%arg0: i32, %arg1: memref<128x256xbf16, #tpu.memory_space<vmem>>, %arg2: memref<256x128xbf16, #tpu.memory_space<vmem>>, %arg3: memref<1x128xf32, #tpu.memory_space<vmem>>, %arg4: memref<128x128xbf16, #tpu.memory_space<vmem>>) attributes {dimension_semantics = [#tpu.dimension_semantics<parallel>], iteration_bounds = array<i64: 1>, scalar_prefetch = 0 : i64, scratch_operands = 0 : i64, tpu.core_type = #tpu.core_type<tc>, window_params = [{transform_indices = @transform_0, window_bounds = array<i64: 128, 256>}, {pipeline_mode = #tpu.pipeline_mode<synchronous>, transform_indices = @transform_1, window_bounds = array<i64: 256, 128>}, {pipeline_mode = #tpu.pipeline_mode<synchronous>, transform_indices = @transform_2, window_bounds = array<i64: 1, 128>}, {transform_indices = @transform_3, window_bounds = array<i64: 128, 128>}]} {
    %c0 = arith.constant 0 : index
    %c0_0 = arith.constant 0 : index
    %0 = vector.load %arg1[%c0, %c0_0] : memref<128x256xbf16, #tpu.memory_space<vmem>>, vector<128x256xbf16>
    %c0_1 = arith.constant 0 : index
    %c0_2 = arith.constant 0 : index
    %1 = vector.load %arg2[%c0_1, %c0_2] : memref<256x128xbf16, #tpu.memory_space<vmem>>, vector<256x128xbf16>
    %cst = arith.constant dense<0.000000e+00> : vector<128x128xf32>
    %2 = tpu.matmul %0, %1, %cst {dimension_numbers = #tpu.dot_dimension_numbers<[1], [0], [0], [1], [0, 0, 1, 1], [], []>} : vector<128x256xbf16>, vector<256x128xbf16>, vector<128x128xf32> -> vector<128x128xf32>
    %c0_3 = arith.constant 0 : index
    %c0_4 = arith.constant 0 : index
    %3 = vector.load %arg3[%c0_3, %c0_4] : memref<1x128xf32, #tpu.memory_space<vmem>>, vector<1x128xf32>
    %4 = vector.broadcast %3 : vector<1x128xf32> to vector<128x128xf32>
    %5 = arith.addf %2, %4 : vector<128x128xf32>
    %cst_5 = arith.constant 0.000000e+00 : f32
    %6 = vector.broadcast %cst_5 : f32 to vector<128x128xf32>
    %7 = arith.maximumf %5, %6 : vector<128x128xf32>
    %8 = arith.truncf %7 : vector<128x128xf32> to vector<128x128xbf16>
    %c0_6 = arith.constant 0 : index
    %c0_7 = arith.constant 0 : index
    %9 = vector.load %arg4[%c0_6, %c0_7] : memref<128x128xbf16, #tpu.memory_space<vmem>>, vector<128x128xbf16>
    tpu.vector_store %arg4[%c0_6, %c0_7], %8 {strides = array<i32>} : memref<128x128xbf16, #tpu.memory_space<vmem>>, vector<128x128xbf16>,
    return
  }
  func.func @transform_0(%arg0: i32) -> (i32, i32) {
    %c0_i32 = arith.constant 0 : i32
    %c0_i32_0 = arith.constant 0 : i32
    return %arg0, %c0_i32 : i32, i32
  }
  func.func @transform_1(%arg0: i32) -> (i32, i32) {
    %c0_i32 = arith.constant 0 : i32
    %c0_i32_0 = arith.constant 0 : i32
    %c0_i32_1 = arith.constant 0 : i32
    return %c0_i32, %c0_i32_0 : i32, i32
  }
  func.func @transform_2(%arg0: i32) -> (i32, i32) {
    %c0_i32 = arith.constant 0 : i32
    %c0_i32_0 = arith.constant 0 : i32
    %c0_i32_1 = arith.constant 0 : i32
    return %c0_i32, %c0_i32_0 : i32, i32
  }
  func.func @transform_3(%arg0: i32) -> (i32, i32) {
    %c0_i32 = arith.constant 0 : i32
    %c0_i32_0 = arith.constant 0 : i32
    return %arg0, %c0_i32 : i32, i32
  }
}

module attributes {stable_mosaic.version = 11 : i64} {
  func.func @_conv_bn_relu_kernel(%arg0: i32, %arg1: memref<32x384xbf16, #tpu.memory_space<vmem>>, %arg2: memref<384x128xbf16, #tpu.memory_space<vmem>>, %arg3: memref<1x128xf32, #tpu.memory_space<vmem>>, %arg4: memref<32x128xbf16, #tpu.memory_space<vmem>>) attributes {dimension_semantics = [#tpu.dimension_semantics<parallel>], iteration_bounds = array<i64: 1>, scalar_prefetch = 0 : i64, scratch_operands = 0 : i64, tpu.core_type = #tpu.core_type<tc>, window_params = [{transform_indices = @transform_0, window_bounds = array<i64: 32, 384>}, {pipeline_mode = #tpu.pipeline_mode<synchronous>, transform_indices = @transform_1, window_bounds = array<i64: 384, 128>}, {pipeline_mode = #tpu.pipeline_mode<synchronous>, transform_indices = @transform_2, window_bounds = array<i64: 1, 128>}, {transform_indices = @transform_3, window_bounds = array<i64: 32, 128>}]} {
    %c0 = arith.constant 0 : index
    %c0_0 = arith.constant 0 : index
    %0 = vector.load %arg1[%c0, %c0_0] : memref<32x384xbf16, #tpu.memory_space<vmem>>, vector<32x384xbf16>
    %c0_1 = arith.constant 0 : index
    %c0_2 = arith.constant 0 : index
    %1 = vector.load %arg2[%c0_1, %c0_2] : memref<384x128xbf16, #tpu.memory_space<vmem>>, vector<384x128xbf16>
    %cst = arith.constant dense<0.000000e+00> : vector<32x128xf32>
    %2 = tpu.matmul %0, %1, %cst {dimension_numbers = #tpu.dot_dimension_numbers<[1], [0], [0], [1], [0, 0, 1, 1], [], []>} : vector<32x384xbf16>, vector<384x128xbf16>, vector<32x128xf32> -> vector<32x128xf32>
    %c0_3 = arith.constant 0 : index
    %c0_4 = arith.constant 0 : index
    %3 = vector.load %arg3[%c0_3, %c0_4] : memref<1x128xf32, #tpu.memory_space<vmem>>, vector<1x128xf32>
    %4 = vector.broadcast %3 : vector<1x128xf32> to vector<32x128xf32>
    %5 = arith.addf %2, %4 : vector<32x128xf32>
    %cst_5 = arith.constant 0.000000e+00 : f32
    %6 = vector.broadcast %cst_5 : f32 to vector<32x128xf32>
    %7 = arith.maximumf %5, %6 : vector<32x128xf32>
    %8 = arith.truncf %7 : vector<32x128xf32> to vector<32x128xbf16>
    %c0_6 = arith.constant 0 : index
    %c0_7 = arith.constant 0 : index
    %9 = vector.load %arg4[%c0_6, %c0_7] : memref<32x128xbf16, #tpu.memory_space<vmem>>, vector<32x128xbf16>
    tpu.vector_store %arg4[%c0_6, %c0_7], %8 {strides = array<i32>} : memref<32x128xbf16, #tpu.memory_space<vmem>>, vector<32x128xbf16>,
    return
  }
  func.func @transform_0(%arg0: i32) -> (i32, i32) {
    %c0_i32 = arith.constant 0 : i32
    %c0_i32_0 = arith.constant 0 : i32
    return %arg0, %c0_i32 : i32, i32
  }
  func.func @transform_1(%arg0: i32) -> (i32, i32) {
    %c0_i32 = arith.constant 0 : i32
    %c0_i32_0 = arith.constant 0 : i32
    %c0_i32_1 = arith.constant 0 : i32
    return %c0_i32, %c0_i32_0 : i32, i32
  }
  func.func @transform_2(%arg0: i32) -> (i32, i32) {
    %c0_i32 = arith.constant 0 : i32
    %c0_i32_0 = arith.constant 0 : i32
    %c0_i32_1 = arith.constant 0 : i32
    return %c0_i32, %c0_i32_0 : i32, i32
  }
  func.func @transform_3(%arg0: i32) -> (i32, i32) {
    %c0_i32 = arith.constant 0 : i32
    %c0_i32_0 = arith.constant 0 : i32
    return %arg0, %c0_i32 : i32, i32
  }
}

</mosaic_0001>

<llo_original>
// kernel: _forward_all.3
$region0: #{_forward_all.3}
  #allocation0 [shape = 'u32[]', space=smem, size = 0x4, offset = 0x4, fixed_abs, tag = 'smem constant byte address 0x4 - core index']
  #allocation1 [shape = 'u32[144,128]{1,0:T(1,128)}', space=vmem, size = 0x12000, scoped, tag = 'internal scratch']
  %s0 = inlined_call_operand.vmem [shape: bf16[512,128], index: 0, kind: input, shape index: {}]
  %s1 = inlined_call_operand.vmem [shape: bf16[128,128], index: 1, kind: input, shape index: {}]
  %s2 = inlined_call_operand.vmem [shape: f32[1,128], index: 2, kind: input, shape index: {}]
  %s3 = inlined_call_operand.vmem [shape: bf16[512,128], index: 3, kind: output, shape index: {}]
  %s4 = sld [smem:[#allocation0]]
  $region45: #{_forward_all.3} parent=0
    _
  %s6 = ssub.s32 1, %s4
  %s7 = scalar_select 0, %s6, %s4
  loop: start=0, step=1, limit=4
  $region2: #{_forward_all.3} parent=0 // loop_pre_header
    _
  $region3: #{_forward_all.3} parent=0 // loop_header
    %s9 = sphi 0, %s13
    %p10 = scmp.ge.s32.totalorder %s9, 4
    %s19 = sphi 0, %s21
    %s22 = sphi 0, %s19
    %s23 = sphi 0, %s22
    %s39 = sphi 0, %s23
    %s43 = sphi 0, %s43
    %s45 = sphi 0, %s43
    %s46 = sphi 0, %s45
    %s60 = sphi 0, %s46
    %s64 = sphi 0, %s64
    %s66 = sphi 0, %s64
    %s67 = sphi 0, %s66
    %s81 = sphi 0, %s67
    %s87 = sphi 0, %s89
    %s90 = sphi 0, %s87
    %s91 = sphi 0, %s90
    %s107 = sphi 0, %s91
  $region4: #{_forward_all.3} parent=0 // loop_header_branch
    %12 = sbr.rel (%p10) target = $region8
  $region5: #{_forward_all.3} parent=0 // loop_body
    %s14 = ssub.s32 %s9, 1
    %s15 = ssub.s32 %s9, 2
    %s16 = sadd.s32 %s9, 1
    %s17 = ssub.s32 %s9, %s16
    %p18 = scmp.eq.s32.totalorder %s17, 0
    %s20 = sadd.s32 %s19, 1
    %s21 = scalar_select %p18, %s19, %s20
    %p24 = pneg %p18
    %p25 = scmp.eq.s32.totalorder %s9, 1
    %p26 = por %p24, %p25
    %p27 = scmp.ne.s32.totalorder %s19, %s22
    %p28 = scmp.eq.s32.totalorder %s9, 0
    %p29 = por %p27, %p28
    %p30 = scmp.ne.s32.totalorder %s19, %s22
    %p31 = scmp.eq.s32.totalorder %s14, 1
    %p32 = por %p30, %p31
    %p33 = scmp.ne.s32.totalorder %s22, %s23
    %p34 = scmp.eq.s32.totalorder %s14, 0
    %p35 = por %p33, %p34
    %p36 = scmp.ne.s32.totalorder %s22, %s23
    %p37 = scmp.eq.s32.totalorder %s15, 1
    %p38 = por %p36, %p37
    %p40 = scmp.ne.s32.totalorder %s23, %s39
    %p41 = scmp.eq.s32.totalorder %s15, 0
    %p42 = por %p40, %p41
    %s44 = sadd.s32 %s43, 1
    %p47 = scmp.eq.s32.totalorder %s9, 1
    %p48 = scmp.ne.s32.totalorder %s43, %s45
    %p49 = scmp.eq.s32.totalorder %s9, 0
    %p50 = por %p48, %p49
    %p51 = scmp.ne.s32.totalorder %s43, %s45
    %p52 = scmp.eq.s32.totalorder %s14, 1
    %p53 = por %p51, %p52
    %p54 = scmp.ne.s32.totalorder %s45, %s46
    %p55 = scmp.eq.s32.totalorder %s14, 0
    %p56 = por %p54, %p55
    %p57 = scmp.ne.s32.totalorder %s45, %s46
    %p58 = scmp.eq.s32.totalorder %s15, 1
    %p59 = por %p57, %p58
    %p61 = scmp.ne.s32.totalorder %s46, %s60
    %p62 = scmp.eq.s32.totalorder %s15, 0
    %p63 = por %p61, %p62
    %s65 = sadd.s32 %s64, 1
    %p68 = scmp.eq.s32.totalorder %s9, 1
    %p69 = scmp.ne.s32.totalorder %s64, %s66
    %p70 = scmp.eq.s32.totalorder %s9, 0
    %p71 = por %p69, %p70
    %p72 = scmp.ne.s32.totalorder %s64, %s66
    %p73 = scmp.eq.s32.totalorder %s14, 1
    %p74 = por %p72, %p73
    %p75 = scmp.ne.s32.totalorder %s66, %s67
    %p76 = scmp.eq.s32.totalorder %s14, 0
    %p77 = por %p75, %p76
    %p78 = scmp.ne.s32.totalorder %s66, %s67
    %p79 = scmp.eq.s32.totalorder %s15, 1
    %p80 = por %p78, %p79
    %p82 = scmp.ne.s32.totalorder %s67, %s81
    %p83 = scmp.eq.s32.totalorder %s15, 0
    %p84 = por %p82, %p83
    %s85 = ssub.s32 %s9, %s16
    %p86 = scmp.eq.s32.totalorder %s85, 0
    %s88 = sadd.s32 %s87, 1
    %s89 = scalar_select %p86, %s87, %s88
    %p92 = pneg %p86
    %p93 = scmp.eq.s32.totalorder %s9, 1
    %p94 = por %p92, %p93
    %p95 = scmp.ne.s32.totalorder %s87, %s90
    %p96 = scmp.eq.s32.totalorder %s9, 0
    %p97 = por %p95, %p96
    %p98 = scmp.ne.s32.totalorder %s87, %s90
    %p99 = scmp.eq.s32.totalorder %s14, 1
    %p100 = por %p98, %p99
    %p101 = scmp.ne.s32.totalorder %s90, %s91
    %p102 = scmp.eq.s32.totalorder %s14, 0
    %p103 = por %p101, %p102
    %p104 = scmp.ne.s32.totalorder %s90, %s91
    %p105 = scmp.eq.s32.totalorder %s15, 1
    %p106 = por %p104, %p105
    %p108 = scmp.ne.s32.totalorder %s91, %s107
    %p109 = scmp.eq.s32.totalorder %s15, 0
    %p110 = por %p108, %p109
    %p111 = scmp.le.s32.totalorder 1, %s9
    %p112 = scmp.lt.s32.totalorder %s9, 3
    %p113 = pnand %p111, %p112
    %p114 = pneg %p113
    // Predicated region
    $region9: #{_forward_all.3} parent=5 // pred_check
      _
    $region10: #{_forward_all.3} parent=5 // pred_check_branch
      %116 = sbr.rel (%p113) target = $region12
    $region11: #{_forward_all.3} parent=5 // pred_region
      %s117 = ssub.s32 %s9, 1
      // Predicated region
      $region13: #{_forward_all.3} parent=11 // pred_check
        %p118 = pneg %p56
      $region14: #{_forward_all.3} parent=11 // pred_check_branch
        %120 = sbr.rel (%p118) target = $region16
      $region15: #{_forward_all.3} parent=11 // pred_region
        _
      $region16: #{_forward_all.3} parent=11 // pred_fallthru
        _
      // Predicated region
      $region17: #{_forward_all.3} parent=11 // pred_check
        %p121 = pneg %p77
      $region18: #{_forward_all.3} parent=11 // pred_check_branch
        %123 = sbr.rel (%p121) target = $region20
      $region19: #{_forward_all.3} parent=11 // pred_region
        _
      $region20: #{_forward_all.3} parent=11 // pred_fallthru
        _
    $region12: #{_forward_all.3} parent=5 // pred_fallthru
      _
    %p124 = scmp.lt.s32.totalorder %s9, 2
    // Predicated region
    $region21: #{_forward_all.3} parent=5 // pred_check
      %p125 = pneg %p124
    $region22: #{_forward_all.3} parent=5 // pred_check_branch
      %127 = sbr.rel (%p125) target = $region24
    $region23: #{_forward_all.3} parent=5 // pred_region
      // Predicated region
      $region25: #{_forward_all.3} parent=23 // pred_check
        %p128 = pneg %p29
      $region26: #{_forward_all.3} parent=23 // pred_check_branch
        %130 = sbr.rel (%p128) target = $region28
      $region27: #{_forward_all.3} parent=23 // pred_region
        %s131 = smul.u32 32, %s9
        %p132 = scmp.lt.s32.totalorder %s131, 63
        %s133 = scalar_select %p132, %s131, 63
        %s134 = smul.addr %s133, 4
        %s135 = scalar_lea.vmem %s0, %s134
        %s136 = smul.u32 32, %s9
      $region28: #{_forward_all.3} parent=23 // pred_fallthru
        _
    $region24: #{_forward_all.3} parent=5 // pred_fallthru
      _
    %p137 = scmp.le.s32.totalorder 1, %s9
    %p138 = scmp.lt.s32.totalorder %s9, 3
    %p139 = pnand %p137, %p138
    %p140 = pneg %p139
    // Predicated region
    $region29: #{_forward_all.3} parent=5 // pred_check
      _
    $region30: #{_forward_all.3} parent=5 // pred_check_branch
      %142 = sbr.rel (%p139) target = $region32
    $region31: #{_forward_all.3} parent=5 // pred_region
      %s143 = ssub.s32 %s9, 1
      %s144 = smul.u32 32, %s14
      %p145 = scmp.lt.s32.totalorder %s144, 63
      %s146 = scalar_select %p145, %s144, 63
      %s147 = smul.addr %s146, 4
      %s148 = scalar_lea.vmem %s0, %s147
      %p149 = pneg %p35
      %p150 = pneg %p32
      %p151 = pneg %p56
      %p152 = pneg %p53
      %p153 = pneg %p77
      %p154 = pneg %p74
      %p155 = pneg %p103
      %p156 = pneg %p100
      %s157 = smul.u32 32, %s14
      %p158 = scmp.lt.s32.totalorder %s157, 63
      %s159 = scalar_select %p158, %s157, 63
      %s160 = smul.addr %s159, 4
      %s161 = scalar_lea.vmem %s3, %s160
      %s162 = smul.u32 32, %s14
      %p163 = scmp.lt.s32.totalorder %s162, 63
      %s164 = scalar_select %p163, %s162, 63
      %s165 = smul.addr %s164, 4
      %s166 = scalar_lea.vmem %s0, %s165
      %s167 = smul.u32 32, %s14
      %s168 = smul.u32 32, %s14
      %p169 = scmp.lt.s32.totalorder %s168, 63
      %s170 = scalar_select %p169, %s168, 63
      %s171 = smul.addr %s170, 4
      %s172 = scalar_lea.vmem %s3, %s171
      %s173 = smul.u32 32, %s14
      %v175 = vld [vmem:[%s166] sm:$0xf]
      %v176 = vld [vmem:[%s166 + $0x4] sm:$0xf]
      %v177 = vld [vmem:[%s166 + $0x8] sm:$0xf]
      %v178 = vld [vmem:[%s166 + $0xc] sm:$0xf]
      %v179 = vld [vmem:[%s166 + $0x10] sm:$0xf]
      %v180 = vld [vmem:[%s166 + $0x14] sm:$0xf]
      %v181 = vld [vmem:[%s166 + $0x18] sm:$0xf]
      %v182 = vld [vmem:[%s166 + $0x1c] sm:$0xf]
      %v183 = vld [vmem:[%s166 + $0x20] sm:$0xf]
      %v184 = vld [vmem:[%s166 + $0x24] sm:$0xf]
      %v185 = vld [vmem:[%s166 + $0x28] sm:$0xf]
      %v186 = vld [vmem:[%s166 + $0x2c] sm:$0xf]
      %v187 = vld [vmem:[%s166 + $0x30] sm:$0xf]
      %v188 = vld [vmem:[%s166 + $0x34] sm:$0xf]
      %v189 = vld [vmem:[%s166 + $0x38] sm:$0xf]
      %v190 = vld [vmem:[%s166 + $0x3c] sm:$0xf]
      %v191 = vld [vmem:[%s166 + $0x40] sm:$0xf]
      %v192 = vld [vmem:[%s166 + $0x44] sm:$0xf]
      %v193 = vld [vmem:[%s166 + $0x48] sm:$0xf]
      %v194 = vld [vmem:[%s166 + $0x4c] sm:$0xf]
      %v195 = vld [vmem:[%s166 + $0x50] sm:$0xf]
      %v196 = vld [vmem:[%s166 + $0x54] sm:$0xf]
      %v197 = vld [vmem:[%s166 + $0x58] sm:$0xf]
      %v198 = vld [vmem:[%s166 + $0x5c] sm:$0xf]
      %v199 = vld [vmem:[%s166 + $0x60] sm:$0xf]
      %v200 = vld [vmem:[%s166 + $0x64] sm:$0xf]
      %v201 = vld [vmem:[%s166 + $0x68] sm:$0xf]
      %v202 = vld [vmem:[%s166 + $0x6c] sm:$0xf]
      %v203 = vld [vmem:[%s166 + $0x70] sm:$0xf]
      %v204 = vld [vmem:[%s166 + $0x74] sm:$0xf]
      %v205 = vld [vmem:[%s166 + $0x78] sm:$0xf]
      %v206 = vld [vmem:[%s166 + $0x7c] sm:$0xf]
      %v207 = vld [vmem:[%s1] sm:$0xf]
      %v208 = vld [vmem:[%s1 + $0x4] sm:$0xf]
      %v209 = vld [vmem:[%s1 + $0x8] sm:$0xf]
      %v210 = vld [vmem:[%s1 + $0xc] sm:$0xf]
      %v211 = vld [vmem:[%s1 + $0x10] sm:$0xf]
      %v212 = vld [vmem:[%s1 + $0x14] sm:$0xf]
      %v213 = vld [vmem:[%s1 + $0x18] sm:$0xf]
      %v214 = vld [vmem:[%s1 + $0x1c] sm:$0xf]
      %v215 = vld [vmem:[%s1 + $0x20] sm:$0xf]
      %v216 = vld [vmem:[%s1 + $0x24] sm:$0xf]
      %v217 = vld [vmem:[%s1 + $0x28] sm:$0xf]
      %v218 = vld [vmem:[%s1 + $0x2c] sm:$0xf]
      %v219 = vld [vmem:[%s1 + $0x30] sm:$0xf]
      %v220 = vld [vmem:[%s1 + $0x34] sm:$0xf]
      %v221 = vld [vmem:[%s1 + $0x38] sm:$0xf]
      %v222 = vld [vmem:[%s1 + $0x3c] sm:$0xf]
      %v223 = vld [vmem:[%s2] sm:$0x1]
      %v225 = vlaneseq
      %v226 = vshrl.u32 %v225, 7
      %v227 = vsub.s32 0, %v226
      %v228 = vrot.slane %v223, %v227
      %v262 = vunpack.c.l.b16 %v175
      %v263 = vunpack.c.l.b16 %v176
      %v264 = vunpack.c.l.b16 %v177
      %v265 = vunpack.c.l.b16 %v178
      %v266 = vunpack.c.l.b16 %v179
      %v267 = vunpack.c.l.b16 %v180
      %v268 = vunpack.c.l.b16 %v181
      %v269 = vunpack.c.l.b16 %v182
      %v270 = vunpack.c.l.b16 %v183
      %v271 = vunpack.c.l.b16 %v184
      %v272 = vunpack.c.l.b16 %v185
      %v273 = vunpack.c.l.b16 %v186
      %v274 = vunpack.c.l.b16 %v187
      %v275 = vunpack.c.l.b16 %v188
      %v276 = vunpack.c.l.b16 %v189
      %v277 = vunpack.c.l.b16 %v190
      %v278 = vunpack.c.l.b16 %v191
      %v279 = vunpack.c.l.b16 %v192
      %v280 = vunpack.c.l.b16 %v193
      %v281 = vunpack.c.l.b16 %v194
      %v282 = vunpack.c.l.b16 %v195
      %v283 = vunpack.c.l.b16 %v196
      %v284 = vunpack.c.l.b16 %v197
      %v285 = vunpack.c.l.b16 %v198
      %v286 = vunpack.c.l.b16 %v199
      %v287 = vunpack.c.l.b16 %v200
      %v288 = vunpack.c.l.b16 %v201
      %v289 = vunpack.c.l.b16 %v202
      %v290 = vunpack.c.l.b16 %v203
      %v291 = vunpack.c.l.b16 %v204
      %v292 = vunpack.c.l.b16 %v205
      %v293 = vunpack.c.l.b16 %v206
      %v294 = vpack.c.b16 %v263, %v262
      %v295 = vpack.c.b16 %v265, %v264
      %v296 = vpack.c.b16 %v267, %v266
      %v297 = vpack.c.b16 %v269, %v268
      %v298 = vpack.c.b16 %v271, %v270
      %v299 = vpack.c.b16 %v273, %v272
      %v300 = vpack.c.b16 %v275, %v274
      %v301 = vpack.c.b16 %v277, %v276
      %v302 = vpack.c.b16 %v279, %v278
      %v303 = vpack.c.b16 %v281, %v280
      %v304 = vpack.c.b16 %v283, %v282
      %v305 = vpack.c.b16 %v285, %v284
      %v306 = vpack.c.b16 %v287, %v286
      %v307 = vpack.c.b16 %v289, %v288
      %v308 = vpack.c.b16 %v291, %v290
      %v309 = vpack.c.b16 %v293, %v292
      %v342 = vunpack.c.l.b16 %v207
      %v343 = vunpack.c.l.b16 %v208
      %v344 = vunpack.c.l.b16 %v209
      %v345 = vunpack.c.l.b16 %v210
      %v346 = vunpack.c.l.b16 %v211
      %v347 = vunpack.c.l.b16 %v212
      %v348 = vunpack.c.l.b16 %v213
      %v349 = vunpack.c.l.b16 %v214
      %v350 = vunpack.c.l.b16 %v215
      %v351 = vunpack.c.l.b16 %v216
      %v352 = vunpack.c.l.b16 %v217
      %v353 = vunpack.c.l.b16 %v218
      %v354 = vunpack.c.l.b16 %v219
      %v355 = vunpack.c.l.b16 %v220
      %v356 = vunpack.c.l.b16 %v221
      %v357 = vunpack.c.l.b16 %v222
      %v358 = vpack.c.b16 %v343, %v342
      %v359 = vpack.c.b16 %v345, %v344
      %v360 = vpack.c.b16 %v347, %v346
      %v361 = vpack.c.b16 %v349, %v348
      %v362 = vpack.c.b16 %v351, %v350
      %v363 = vpack.c.b16 %v353, %v352
      %v364 = vpack.c.b16 %v355, %v354
      %v365 = vpack.c.b16 %v357, %v356
      %374 = vmatprep.subr.bf16.mxu0 0
      %375 = vmatpush1.bf16.msra.mxu0 %v358
      %376 = vmatprep.subr.bf16.mxu0 0
      %377 = vmatpush1.bf16.msra.mxu0 %v359
      %378 = vmatprep.subr.bf16.mxu0 0
      %379 = vmatpush1.bf16.msra.mxu0 %v360
      %380 = vmatprep.subr.bf16.mxu0 0
      %381 = vmatpush1.bf16.msra.mxu0 %v361
      %382 = vmatprep.subr.bf16.mxu0 0
      %383 = vmatpush1.bf16.msra.mxu0 %v362
      %384 = vmatprep.subr.bf16.mxu0 0
      %385 = vmatpush1.bf16.msra.mxu0 %v363
      %386 = vmatprep.subr.bf16.mxu0 0
      %387 = vmatpush1.bf16.msra.mxu0 %v364
      %388 = vmatprep.subr.bf16.mxu0 0
      %389 = vmatpush1.bf16.msra.mxu0 %v365
      %390 = vmatprep.subr.bf16.mxu0 0
      %391 = vmatpush1.bf16.msra.mxu0 0
      %392 = vmatprep.subr.bf16.mxu0 0
      %393 = vmatpush1.bf16.msra.mxu0 0
      %394 = vmatprep.subr.bf16.mxu0 0
      %395 = vmatpush1.bf16.msra.mxu0 0
      %396 = vmatprep.subr.bf16.mxu0 0
      %397 = vmatpush1.bf16.msra.mxu0 0
      %398 = vmatprep.subr.bf16.mxu0 0
      %399 = vmatpush1.bf16.msra.mxu0 0
      %400 = vmatprep.subr.bf16.mxu0 0
      %401 = vmatpush1.bf16.msra.mxu0 0
      %402 = vmatprep.subr.bf16.mxu0 0
      %403 = vmatpush1.bf16.msra.mxu0 0
      %404 = vmatprep.subr.bf16.mxu0 0
      %405 = vmatpush1.bf16.msra.mxu0 0
      %406 = vmatprep.mubr.bf16.mxu0 0
      %407 = vmatmul.mubr.bf16.gmra.mrb[0].mxu0 %v294
      %v408 = vpop.f32.mrb[0].mxu0
      %v409 = vadd.f32 %v228, %v408
      %v410 = vpop.f32.mrb[0].mxu0
      %v411 = vpop.f32.mrb[0].mxu0
      %v412 = vadd.f32 %v228, %v411
      %v413 = vpop.f32.mrb[0].mxu0
      %414 = vmatprep.mubr.bf16.mxu0 0
      %415 = vmatmul.mubr.bf16.gmra.mrb[0].mxu0 %v295
      %v416 = vpop.f32.mrb[0].mxu0
      %v417 = vadd.f32 %v228, %v416
      %v418 = vpop.f32.mrb[0].mxu0
      %v419 = vpop.f32.mrb[0].mxu0
      %v420 = vadd.f32 %v228, %v419
      %v421 = vpop.f32.mrb[0].mxu0
      %422 = vmatprep.mubr.bf16.mxu0 0
      %423 = vmatmul.mubr.bf16.gmra.mrb[0].mxu0 %v296
      %v424 = vpop.f32.mrb[0].mxu0
      %v425 = vadd.f32 %v228, %v424
      %v426 = vpop.f32.mrb[0].mxu0
      %v427 = vpop.f32.mrb[0].mxu0
      %v428 = vadd.f32 %v228, %v427
      %v429 = vpop.f32.mrb[0].mxu0
      %430 = vmatprep.mubr.bf16.mxu0 0
      %431 = vmatmul.mubr.bf16.gmra.mrb[0].mxu0 %v297
      %v432 = vpop.f32.mrb[0].mxu0
      %v433 = vadd.f32 %v228, %v432
      %v434 = vpop.f32.mrb[0].mxu0
      %v435 = vpop.f32.mrb[0].mxu0
      %v436 = vadd.f32 %v228, %v435
      %v437 = vpop.f32.mrb[0].mxu0
      %438 = vmatprep.mubr.bf16.mxu0 0
      %439 = vmatmul.mubr.bf16.gmra.mrb[0].mxu0 %v298
      %v440 = vpop.f32.mrb[0].mxu0
      %v441 = vadd.f32 %v228, %v440
      %v442 = vpop.f32.mrb[0].mxu0
      %v443 = vpop.f32.mrb[0].mxu0
      %v444 = vadd.f32 %v228, %v443
      %v445 = vpop.f32.mrb[0].mxu0
      %446 = vmatprep.mubr.bf16.mxu0 0
      %447 = vmatmul.mubr.bf16.gmra.mrb[0].mxu0 %v299
      %v448 = vpop.f32.mrb[0].mxu0
      %v449 = vadd.f32 %v228, %v448
      %v450 = vpop.f32.mrb[0].mxu0
      %v451 = vpop.f32.mrb[0].mxu0
      %v452 = vadd.f32 %v228, %v451
      %v453 = vpop.f32.mrb[0].mxu0
      %454 = vmatprep.mubr.bf16.mxu0 0
      %455 = vmatmul.mubr.bf16.gmra.mrb[0].mxu0 %v300
      %v456 = vpop.f32.mrb[0].mxu0
      %v457 = vadd.f32 %v228, %v456
      %v458 = vpop.f32.mrb[0].mxu0
      %v459 = vpop.f32.mrb[0].mxu0
      %v460 = vadd.f32 %v228, %v459
      %v461 = vpop.f32.mrb[0].mxu0
      %462 = vmatprep.mubr.bf16.mxu0 0
      %463 = vmatmul.mubr.bf16.gmra.mrb[0].mxu0 %v301
      %v464 = vpop.f32.mrb[0].mxu0
      %v465 = vadd.f32 %v228, %v464
      %v466 = vpop.f32.mrb[0].mxu0
      %v467 = vpop.f32.mrb[0].mxu0
      %v468 = vadd.f32 %v228, %v467
      %v469 = vpop.f32.mrb[0].mxu0
      %470 = vmatprep.mubr.bf16.mxu0 0
      %471 = vmatmul.mubr.bf16.gmra.mrb[0].mxu0 %v302
      %v472 = vpop.f32.mrb[0].mxu0
      %v473 = vadd.f32 %v228, %v472
      %v474 = vpop.f32.mrb[0].mxu0
      %v475 = vpop.f32.mrb[0].mxu0
      %v476 = vadd.f32 %v228, %v475
      %v477 = vpop.f32.mrb[0].mxu0
      %478 = vmatprep.mubr.bf16.mxu0 0
      %479 = vmatmul.mubr.bf16.gmra.mrb[0].mxu0 %v303
      %v480 = vpop.f32.mrb[0].mxu0
      %v481 = vadd.f32 %v228, %v480
      %v482 = vpop.f32.mrb[0].mxu0
      %v483 = vpop.f32.mrb[0].mxu0
      %v484 = vadd.f32 %v228, %v483
      %v485 = vpop.f32.mrb[0].mxu0
      %486 = vmatprep.mubr.bf16.mxu0 0
      %487 = vmatmul.mubr.bf16.gmra.mrb[0].mxu0 %v304
      %v488 = vpop.f32.mrb[0].mxu0
      %v489 = vadd.f32 %v228, %v488
      %v490 = vpop.f32.mrb[0].mxu0
      %v491 = vpop.f32.mrb[0].mxu0
      %v492 = vadd.f32 %v228, %v491
      %v493 = vpop.f32.mrb[0].mxu0
      %494 = vmatprep.mubr.bf16.mxu0 0
      %495 = vmatmul.mubr.bf16.gmra.mrb[0].mxu0 %v305
      %v496 = vpop.f32.mrb[0].mxu0
      %v497 = vadd.f32 %v228, %v496
      %v498 = vpop.f32.mrb[0].mxu0
      %v499 = vpop.f32.mrb[0].mxu0
      %v500 = vadd.f32 %v228, %v499
      %v501 = vpop.f32.mrb[0].mxu0
      %502 = vmatprep.mubr.bf16.mxu0 0
      %503 = vmatmul.mubr.bf16.gmra.mrb[0].mxu0 %v306
      %v504 = vpop.f32.mrb[0].mxu0
      %v505 = vadd.f32 %v228, %v504
      %v506 = vpop.f32.mrb[0].mxu0
      %v507 = vpop.f32.mrb[0].mxu0
      %v508 = vadd.f32 %v228, %v507
      %v509 = vpop.f32.mrb[0].mxu0
      %510 = vmatprep.mubr.bf16.mxu0 0
      %511 = vmatmul.mubr.bf16.gmra.mrb[0].mxu0 %v307
      %v512 = vpop.f32.mrb[0].mxu0
      %v513 = vadd.f32 %v228, %v512
      %v514 = vpop.f32.mrb[0].mxu0
      %v515 = vpop.f32.mrb[0].mxu0
      %v516 = vadd.f32 %v228, %v515
      %v517 = vpop.f32.mrb[0].mxu0
      %518 = vmatprep.mubr.bf16.mxu0 0
      %519 = vmatmul.mubr.bf16.gmra.mrb[0].mxu0 %v308
      %v520 = vpop.f32.mrb[0].mxu0
      %v521 = vadd.f32 %v228, %v520
      %v522 = vpop.f32.mrb[0].mxu0
      %v523 = vpop.f32.mrb[0].mxu0
      %v524 = vadd.f32 %v228, %v523
      %v525 = vpop.f32.mrb[0].mxu0
      %526 = vmatprep.mubr.bf16.mxu0 0
      %527 = vmatmul.mubr.bf16.gmra.mrb[0].mxu0 %v309
      %v528 = vpop.f32.mrb[0].mxu0
      %v529 = vadd.f32 %v228, %v528
      %v530 = vpop.f32.mrb[0].mxu0
      %v531 = vpop.f32.mrb[0].mxu0
      %v532 = vadd.f32 %v228, %v531
      %v533 = vpop.f32.mrb[0].mxu0
      %534 = vdwg.mxu0
      %v535 = vmax.f32 %v409, 0.0
      %v536 = vmax.f32 %v412, 0.0
      %v537 = vmax.f32 %v417, 0.0
      %v538 = vmax.f32 %v420, 0.0
      %v539 = vmax.f32 %v425, 0.0
      %v540 = vmax.f32 %v428, 0.0
      %v541 = vmax.f32 %v433, 0.0
      %v542 = vmax.f32 %v436, 0.0
      %v543 = vmax.f32 %v441, 0.0
      %v544 = vmax.f32 %v444, 0.0
      %v545 = vmax.f32 %v449, 0.0
      %v546 = vmax.f32 %v452, 0.0
      %v547 = vmax.f32 %v457, 0.0
      %v548 = vmax.f32 %v460, 0.0
      %v549 = vmax.f32 %v465, 0.0
      %v550 = vmax.f32 %v468, 0.0
      %v551 = vmax.f32 %v473, 0.0
      %v552 = vmax.f32 %v476, 0.0
      %v553 = vmax.f32 %v481, 0.0
      %v554 = vmax.f32 %v484, 0.0
      %v555 = vmax.f32 %v489, 0.0
      %v556 = vmax.f32 %v492, 0.0
      %v557 = vmax.f32 %v497, 0.0
      %v558 = vmax.f32 %v500, 0.0
      %v559 = vmax.f32 %v505, 0.0
      %v560 = vmax.f32 %v508, 0.0
      %v561 = vmax.f32 %v513, 0.0
      %v562 = vmax.f32 %v516, 0.0
      %v563 = vmax.f32 %v521, 0.0
      %v564 = vmax.f32 %v524, 0.0
      %v565 = vmax.f32 %v529, 0.0
      %v566 = vmax.f32 %v532, 0.0
      %v567 = vpack.c.bf16 %v536, %v535
      %v568 = vpack.c.bf16 %v538, %v537
      %v569 = vpack.c.bf16 %v540, %v539
      %v570 = vpack.c.bf16 %v542, %v541
      %v571 = vpack.c.bf16 %v544, %v543
      %v572 = vpack.c.bf16 %v546, %v545
      %v573 = vpack.c.bf16 %v548, %v547
      %v574 = vpack.c.bf16 %v550, %v549
      %v575 = vpack.c.bf16 %v552, %v551
      %v576 = vpack.c.bf16 %v554, %v553
      %v577 = vpack.c.bf16 %v556, %v555
      %v578 = vpack.c.bf16 %v558, %v557
      %v579 = vpack.c.bf16 %v560, %v559
      %v580 = vpack.c.bf16 %v562, %v561
      %v581 = vpack.c.bf16 %v564, %v563
      %v582 = vpack.c.bf16 %v566, %v565
      %v599 = vunpack.c.l.b16 %v567
      %v600 = vunpack.c.h.b16 %v567
      %v601 = vunpack.c.l.b16 %v568
      %v602 = vunpack.c.h.b16 %v568
      %v603 = vunpack.c.l.b16 %v569
      %v604 = vunpack.c.h.b16 %v569
      %v605 = vunpack.c.l.b16 %v570
      %v606 = vunpack.c.h.b16 %v570
      %v607 = vunpack.c.l.b16 %v571
      %v608 = vunpack.c.h.b16 %v571
      %v609 = vunpack.c.l.b16 %v572
      %v610 = vunpack.c.h.b16 %v572
      %v611 = vunpack.c.l.b16 %v573
      %v612 = vunpack.c.h.b16 %v573
      %v613 = vunpack.c.l.b16 %v574
      %v614 = vunpack.c.h.b16 %v574
      %v615 = vunpack.c.l.b16 %v575
      %v616 = vunpack.c.h.b16 %v575
      %v617 = vunpack.c.l.b16 %v576
      %v618 = vunpack.c.h.b16 %v576
      %v619 = vunpack.c.l.b16 %v577
      %v620 = vunpack.c.h.b16 %v577
      %v621 = vunpack.c.l.b16 %v578
      %v622 = vunpack.c.h.b16 %v578
      %v623 = vunpack.c.l.b16 %v579
      %v624 = vunpack.c.h.b16 %v579
      %v625 = vunpack.c.l.b16 %v580
      %v626 = vunpack.c.h.b16 %v580
      %v627 = vunpack.c.l.b16 %v581
      %v628 = vunpack.c.h.b16 %v581
      %v629 = vunpack.c.l.b16 %v582
      %v630 = vunpack.c.h.b16 %v582
      %v631 = vpack.c.b16 %v599, %v599
      %v632 = vpack.c.b16 %v600, %v600
      %v633 = vpack.c.b16 %v601, %v601
      %v634 = vpack.c.b16 %v602, %v602
      %v635 = vpack.c.b16 %v603, %v603
      %v636 = vpack.c.b16 %v604, %v604
      %v637 = vpack.c.b16 %v605, %v605
      %v638 = vpack.c.b16 %v606, %v606
      %v639 = vpack.c.b16 %v607, %v607
      %v640 = vpack.c.b16 %v608, %v608
      %v641 = vpack.c.b16 %v609, %v609
      %v642 = vpack.c.b16 %v610, %v610
      %v643 = vpack.c.b16 %v611, %v611
      %v644 = vpack.c.b16 %v612, %v612
      %v645 = vpack.c.b16 %v613, %v613
      %v646 = vpack.c.b16 %v614, %v614
      %v647 = vpack.c.b16 %v615, %v615
      %v648 = vpack.c.b16 %v616, %v616
      %v649 = vpack.c.b16 %v617, %v617
      %v650 = vpack.c.b16 %v618, %v618
      %v651 = vpack.c.b16 %v619, %v619
      %v652 = vpack.c.b16 %v620, %v620
      %v653 = vpack.c.b16 %v621, %v621
      %v654 = vpack.c.b16 %v622, %v622
      %v655 = vpack.c.b16 %v623, %v623
      %v656 = vpack.c.b16 %v624, %v624
      %v657 = vpack.c.b16 %v625, %v625
      %v658 = vpack.c.b16 %v626, %v626
      %v659 = vpack.c.b16 %v627, %v627
      %v660 = vpack.c.b16 %v628, %v628
      %v661 = vpack.c.b16 %v629, %v629
      %v662 = vpack.c.b16 %v630, %v630
      %695 = vst [vmem:[%s172] sm:$0xf] %v631
      %696 = vst [vmem:[%s172 + $0x4] sm:$0xf] %v632
      %697 = vst [vmem:[%s172 + $0x8] sm:$0xf] %v633
      %698 = vst [vmem:[%s172 + $0xc] sm:$0xf] %v634
      %699 = vst [vmem:[%s172 + $0x10] sm:$0xf] %v635
      %700 = vst [vmem:[%s172 + $0x14] sm:$0xf] %v636
      %701 = vst [vmem:[%s172 + $0x18] sm:$0xf] %v637
      %702 = vst [vmem:[%s172 + $0x1c] sm:$0xf] %v638
      %703 = vst [vmem:[%s172 + $0x20] sm:$0xf] %v639
      %704 = vst [vmem:[%s172 + $0x24] sm:$0xf] %v640
      %705 = vst [vmem:[%s172 + $0x28] sm:$0xf] %v641
      %706 = vst [vmem:[%s172 + $0x2c] sm:$0xf] %v642
      %707 = vst [vmem:[%s172 + $0x30] sm:$0xf] %v643
      %708 = vst [vmem:[%s172 + $0x34] sm:$0xf] %v644
      %709 = vst [vmem:[%s172 + $0x38] sm:$0xf] %v645
      %710 = vst [vmem:[%s172 + $0x3c] sm:$0xf] %v646
      %711 = vst [vmem:[%s172 + $0x40] sm:$0xf] %v647
      %712 = vst [vmem:[%s172 + $0x44] sm:$0xf] %v648
      %713 = vst [vmem:[%s172 + $0x48] sm:$0xf] %v649
      %714 = vst [vmem:[%s172 + $0x4c] sm:$0xf] %v650
      %715 = vst [vmem:[%s172 + $0x50] sm:$0xf] %v651
      %716 = vst [vmem:[%s172 + $0x54] sm:$0xf] %v652
      %717 = vst [vmem:[%s172 + $0x58] sm:$0xf] %v653
      %718 = vst [vmem:[%s172 + $0x5c] sm:$0xf] %v654
      %719 = vst [vmem:[%s172 + $0x60] sm:$0xf] %v655
      %720 = vst [vmem:[%s172 + $0x64] sm:$0xf] %v656
      %721 = vst [vmem:[%s172 + $0x68] sm:$0xf] %v657
      %722 = vst [vmem:[%s172 + $0x6c] sm:$0xf] %v658
      %723 = vst [vmem:[%s172 + $0x70] sm:$0xf] %v659
      %724 = vst [vmem:[%s172 + $0x74] sm:$0xf] %v660
      %725 = vst [vmem:[%s172 + $0x78] sm:$0xf] %v661
      %726 = vst [vmem:[%s172 + $0x7c] sm:$0xf] %v662
      %s727 = smul.u32 32, %s14
      %p728 = scmp.lt.s32.totalorder %s727, 63
      %s729 = scalar_select %p728, %s727, 63
      %s730 = smul.addr %s729, 4
      %s731 = scalar_lea.vmem %s3, %s730
      // Predicated region
      $region33: #{_forward_all.3} parent=31 // pred_check
        %p732 = pneg %p100
      $region34: #{_forward_all.3} parent=31 // pred_check_branch
        %734 = sbr.rel (%p732) target = $region36
      $region35: #{_forward_all.3} parent=31 // pred_region
        %s735 = smul.u32 32, %s14
      $region36: #{_forward_all.3} parent=31 // pred_fallthru
        _
    $region32: #{_forward_all.3} parent=5 // pred_fallthru
      _
    %p736 = scmp.le.s32.totalorder 2, %s9
    // Predicated region
    $region37: #{_forward_all.3} parent=5 // pred_check
      %p737 = pneg %p736
    $region38: #{_forward_all.3} parent=5 // pred_check_branch
      %739 = sbr.rel (%p737) target = $region40
    $region39: #{_forward_all.3} parent=5 // pred_region
      %s740 = ssub.s32 %s9, 2
      // Predicated region
      $region41: #{_forward_all.3} parent=39 // pred_check
        %p741 = pneg %p106
      $region42: #{_forward_all.3} parent=39 // pred_check_branch
        %743 = sbr.rel (%p741) target = $region44
      $region43: #{_forward_all.3} parent=39 // pred_region
        %s744 = smul.u32 32, %s15
        %p745 = scmp.lt.s32.totalorder %s744, 63
        %s746 = scalar_select %p745, %s744, 63
        %s747 = smul.addr %s746, 4
        %s748 = scalar_lea.vmem %s3, %s747
      $region44: #{_forward_all.3} parent=39 // pred_fallthru
        _
    $region40: #{_forward_all.3} parent=5 // pred_fallthru
      _
  $region6: #{_forward_all.3} parent=0 // loop_footer
    %s13 = sadd.s32 1, %s9
  $region7: #{_forward_all.3} parent=0 // loop_footer_branch
    %8 = sbr.rel target = $region3
  $region8: #{_forward_all.3} parent=0 // loop_exit
    _

// kernel: _forward_all.4
$region0: #{_forward_all.4}
  #allocation0 [shape = 'u32[]', space=smem, size = 0x4, offset = 0x4, fixed_abs, tag = 'smem constant byte address 0x4 - core index']
  #allocation1 [shape = 'u32[144,128]{1,0:T(1,128)}', space=vmem, size = 0x12000, scoped, tag = 'internal scratch']
  %s0 = inlined_call_operand.vmem [shape: bf16[128,256], index: 0, kind: input, shape index: {}]
  %s1 = inlined_call_operand.vmem [shape: bf16[256,128], index: 1, kind: input, shape index: {}]
  %s2 = inlined_call_operand.vmem [shape: f32[1,128], index: 2, kind: input, shape index: {}]
  %s3 = inlined_call_operand.vmem [shape: bf16[128,128], index: 3, kind: output, shape index: {}]
  %s4 = sld [smem:[#allocation0]]
  $region22: #{_forward_all.4} parent=0
    _
  %s6 = ssub.s32 1, %s4
  %s7 = scalar_select 0, %s6, %s4
  // Predicated region
  $region2: #{_forward_all.4} parent=0 // pred_check
    _
  $region3: #{_forward_all.4} parent=0 // pred_check_branch
    %9 = sbr.rel (0) target = $region5
  $region4: #{_forward_all.4} parent=0 // pred_region
    _
  $region5: #{_forward_all.4} parent=0 // pred_fallthru
    _
  // Predicated region
  $region6: #{_forward_all.4} parent=0 // pred_check
    _
  $region7: #{_forward_all.4} parent=0 // pred_check_branch
    %11 = sbr.rel (0) target = $region9
  $region8: #{_forward_all.4} parent=0 // pred_region
    _
  $region9: #{_forward_all.4} parent=0 // pred_fallthru
    _
  // Predicated region
  $region10: #{_forward_all.4} parent=0 // pred_check
    _
  $region11: #{_forward_all.4} parent=0 // pred_check_branch
    %13 = sbr.rel (0) target = $region13
  $region12: #{_forward_all.4} parent=0 // pred_region
    _
  $region13: #{_forward_all.4} parent=0 // pred_fallthru
    _
  %v15 = vld [vmem:[%s0] sm:$0xff]
  %v16 = vld [vmem:[%s0 + $0x8] sm:$0xff]
  %v17 = vld [vmem:[%s0 + $0x10] sm:$0xff]
  %v18 = vld [vmem:[%s0 + $0x18] sm:$0xff]
  %v19 = vld [vmem:[%s0 + $0x20] sm:$0xff]
  %v20 = vld [vmem:[%s0 + $0x28] sm:$0xff]
  %v21 = vld [vmem:[%s0 + $0x30] sm:$0xff]
  %v22 = vld [vmem:[%s0 + $0x38] sm:$0xff]
  %v23 = vld [vmem:[%s0 + $0x40] sm:$0xff]
  %v24 = vld [vmem:[%s0 + $0x48] sm:$0xff]
  %v25 = vld [vmem:[%s0 + $0x50] sm:$0xff]
  %v26 = vld [vmem:[%s0 + $0x58] sm:$0xff]
  %v27 = vld [vmem:[%s0 + $0x60] sm:$0xff]
  %v28 = vld [vmem:[%s0 + $0x68] sm:$0xff]
  %v29 = vld [vmem:[%s0 + $0x70] sm:$0xff]
  %v30 = vld [vmem:[%s0 + $0x78] sm:$0xff]
  %v31 = vld [vmem:[%s1] sm:$0xf]
  %v32 = vld [vmem:[%s1 + $0x4] sm:$0xf]
  %v33 = vld [vmem:[%s1 + $0x8] sm:$0xf]
  %v34 = vld [vmem:[%s1 + $0xc] sm:$0xf]
  %v35 = vld [vmem:[%s1 + $0x10] sm:$0xf]
  %v36 = vld [vmem:[%s1 + $0x14] sm:$0xf]
  %v37 = vld [vmem:[%s1 + $0x18] sm:$0xf]
  %v38 = vld [vmem:[%s1 + $0x1c] sm:$0xf]
  %v39 = vld [vmem:[%s1 + $0x20] sm:$0xf]
  %v40 = vld [vmem:[%s1 + $0x24] sm:$0xf]
  %v41 = vld [vmem:[%s1 + $0x28] sm:$0xf]
  %v42 = vld [vmem:[%s1 + $0x2c] sm:$0xf]
  %v43 = vld [vmem:[%s1 + $0x30] sm:$0xf]
  %v44 = vld [vmem:[%s1 + $0x34] sm:$0xf]
  %v45 = vld [vmem:[%s1 + $0x38] sm:$0xf]
  %v46 = vld [vmem:[%s1 + $0x3c] sm:$0xf]
  %v47 = vld [vmem:[%s1 + $0x40] sm:$0xf]
  %v48 = vld [vmem:[%s1 + $0x44] sm:$0xf]
  %v49 = vld [vmem:[%s1 + $0x48] sm:$0xf]
  %v50 = vld [vmem:[%s1 + $0x4c] sm:$0xf]
  %v51 = vld [vmem:[%s1 + $0x50] sm:$0xf]
  %v52 = vld [vmem:[%s1 + $0x54] sm:$0xf]
  %v53 = vld [vmem:[%s1 + $0x58] sm:$0xf]
  %v54 = vld [vmem:[%s1 + $0x5c] sm:$0xf]
  %v55 = vld [vmem:[%s1 + $0x60] sm:$0xf]
  %v56 = vld [vmem:[%s1 + $0x64] sm:$0xf]
  %v57 = vld [vmem:[%s1 + $0x68] sm:$0xf]
  %v58 = vld [vmem:[%s1 + $0x6c] sm:$0xf]
  %v59 = vld [vmem:[%s1 + $0x70] sm:$0xf]
  %v60 = vld [vmem:[%s1 + $0x74] sm:$0xf]
  %v61 = vld [vmem:[%s1 + $0x78] sm:$0xf]
  %v62 = vld [vmem:[%s1 + $0x7c] sm:$0xf]
  %v63 = vld [vmem:[%s2] sm:$0x1]
  %v65 = vlaneseq
  %v66 = vshrl.u32 %v65, 7
  %v67 = vsub.s32 0, %v66
  %v68 = vrot.slane %v63, %v67
  %v86 = vunpack.c.l.b16 %v15
  %v87 = vunpack.c.h.b16 %v15
  %v88 = vunpack.c.l.b16 %v16
  %v89 = vunpack.c.h.b16 %v16
  %v90 = vunpack.c.l.b16 %v17
  %v91 = vunpack.c.h.b16 %v17
  %v92 = vunpack.c.l.b16 %v18
  %v93 = vunpack.c.h.b16 %v18
  %v94 = vunpack.c.l.b16 %v19
  %v95 = vunpack.c.h.b16 %v19
  %v96 = vunpack.c.l.b16 %v20
  %v97 = vunpack.c.h.b16 %v20
  %v98 = vunpack.c.l.b16 %v21
  %v99 = vunpack.c.h.b16 %v21
  %v100 = vunpack.c.l.b16 %v22
  %v101 = vunpack.c.h.b16 %v22
  %v102 = vunpack.c.l.b16 %v23
  %v103 = vunpack.c.h.b16 %v23
  %v104 = vunpack.c.l.b16 %v24
  %v105 = vunpack.c.h.b16 %v24
  %v106 = vunpack.c.l.b16 %v25
  %v107 = vunpack.c.h.b16 %v25
  %v108 = vunpack.c.l.b16 %v26
  %v109 = vunpack.c.h.b16 %v26
  %v110 = vunpack.c.l.b16 %v27
  %v111 = vunpack.c.h.b16 %v27
  %v112 = vunpack.c.l.b16 %v28
  %v113 = vunpack.c.h.b16 %v28
  %v114 = vunpack.c.l.b16 %v29
  %v115 = vunpack.c.h.b16 %v29
  %v116 = vunpack.c.l.b16 %v30
  %v117 = vunpack.c.h.b16 %v30
  %v118 = vpack.c.b16 %v88, %v86
  %v119 = vpack.c.b16 %v89, %v87
  %v120 = vpack.c.b16 %v92, %v90
  %v121 = vpack.c.b16 %v93, %v91
  %v122 = vpack.c.b16 %v96, %v94
  %v123 = vpack.c.b16 %v97, %v95
  %v124 = vpack.c.b16 %v100, %v98
  %v125 = vpack.c.b16 %v101, %v99
  %v126 = vpack.c.b16 %v104, %v102
  %v127 = vpack.c.b16 %v105, %v103
  %v128 = vpack.c.b16 %v108, %v106
  %v129 = vpack.c.b16 %v109, %v107
  %v130 = vpack.c.b16 %v112, %v110
  %v131 = vpack.c.b16 %v113, %v111
  %v132 = vpack.c.b16 %v116, %v114
  %v133 = vpack.c.b16 %v117, %v115
  %v182 = vunpack.c.l.b16 %v31
  %v183 = vunpack.c.l.b16 %v32
  %v184 = vunpack.c.l.b16 %v33
  %v185 = vunpack.c.l.b16 %v34
  %v186 = vunpack.c.l.b16 %v35
  %v187 = vunpack.c.l.b16 %v36
  %v188 = vunpack.c.l.b16 %v37
  %v189 = vunpack.c.l.b16 %v38
  %v190 = vunpack.c.l.b16 %v39
  %v191 = vunpack.c.l.b16 %v40
  %v192 = vunpack.c.l.b16 %v41
  %v193 = vunpack.c.l.b16 %v42
  %v194 = vunpack.c.l.b16 %v43
  %v195 = vunpack.c.l.b16 %v44
  %v196 = vunpack.c.l.b16 %v45
  %v197 = vunpack.c.l.b16 %v46
  %v198 = vunpack.c.l.b16 %v47
  %v199 = vunpack.c.l.b16 %v48
  %v200 = vunpack.c.l.b16 %v49
  %v201 = vunpack.c.l.b16 %v50
  %v202 = vunpack.c.l.b16 %v51
  %v203 = vunpack.c.l.b16 %v52
  %v204 = vunpack.c.l.b16 %v53
  %v205 = vunpack.c.l.b16 %v54
  %v206 = vunpack.c.l.b16 %v55
  %v207 = vunpack.c.l.b16 %v56
  %v208 = vunpack.c.l.b16 %v57
  %v209 = vunpack.c.l.b16 %v58
  %v210 = vunpack.c.l.b16 %v59
  %v211 = vunpack.c.l.b16 %v60
  %v212 = vunpack.c.l.b16 %v61
  %v213 = vunpack.c.l.b16 %v62
  %v214 = vpack.c.b16 %v183, %v182
  %v215 = vpack.c.b16 %v185, %v184
  %v216 = vpack.c.b16 %v187, %v186
  %v217 = vpack.c.b16 %v189, %v188
  %v218 = vpack.c.b16 %v191, %v190
  %v219 = vpack.c.b16 %v193, %v192
  %v220 = vpack.c.b16 %v195, %v194
  %v221 = vpack.c.b16 %v197, %v196
  %v222 = vpack.c.b16 %v199, %v198
  %v223 = vpack.c.b16 %v201, %v200
  %v224 = vpack.c.b16 %v203, %v202
  %v225 = vpack.c.b16 %v205, %v204
  %v226 = vpack.c.b16 %v207, %v206
  %v227 = vpack.c.b16 %v209, %v208
  %v228 = vpack.c.b16 %v211, %v210
  %v229 = vpack.c.b16 %v213, %v212
  %246 = vmatprep.subr.bf16.mxu0 0
  %247 = vmatpush1.bf16.msra.mxu0 %v214
  %248 = vmatprep.subr.bf16.mxu0 0
  %249 = vmatpush1.bf16.msra.mxu0 %v215
  %250 = vmatprep.subr.bf16.mxu0 0
  %251 = vmatpush1.bf16.msra.mxu0 %v216
  %252 = vmatprep.subr.bf16.mxu0 0
  %253 = vmatpush1.bf16.msra.mxu0 %v217
  %254 = vmatprep.subr.bf16.mxu0 0
  %255 = vmatpush1.bf16.msra.mxu0 %v218
  %256 = vmatprep.subr.bf16.mxu0 0
  %257 = vmatpush1.bf16.msra.mxu0 %v219
  %258 = vmatprep.subr.bf16.mxu0 0
  %259 = vmatpush1.bf16.msra.mxu0 %v220
  %260 = vmatprep.subr.bf16.mxu0 0
  %261 = vmatpush1.bf16.msra.mxu0 %v221
  %262 = vmatprep.subr.bf16.mxu0 0
  %263 = vmatpush1.bf16.msra.mxu0 %v222
  %264 = vmatprep.subr.bf16.mxu0 0
  %265 = vmatpush1.bf16.msra.mxu0 %v223
  %266 = vmatprep.subr.bf16.mxu0 0
  %267 = vmatpush1.bf16.msra.mxu0 %v224
  %268 = vmatprep.subr.bf16.mxu0 0
  %269 = vmatpush1.bf16.msra.mxu0 %v225
  %270 = vmatprep.subr.bf16.mxu0 0
  %271 = vmatpush1.bf16.msra.mxu0 %v226
  %272 = vmatprep.subr.bf16.mxu0 0
  %273 = vmatpush1.bf16.msra.mxu0 %v227
  %274 = vmatprep.subr.bf16.mxu0 0
  %275 = vmatpush1.bf16.msra.mxu0 %v228
  %276 = vmatprep.subr.bf16.mxu0 0
  %277 = vmatpush1.bf16.msra.mxu0 %v229
  %278 = vmatprep.mubr.bf16.mxu0 %v119
  %279 = vmatmul.mubr.bf16.gmra.mrb[0].mxu0 %v118
  %v280 = vpop.f32.mrb[0].mxu0
  %v281 = vadd.f32 %v68, %v280
  %v282 = vpop.f32.mrb[0].mxu0
  %v283 = vpop.f32.mrb[0].mxu0
  %v284 = vadd.f32 %v68, %v283
  %v285 = vpop.f32.mrb[0].mxu0
  %286 = vmatprep.mubr.bf16.mxu0 %v121
  %287 = vmatmul.mubr.bf16.gmra.mrb[0].mxu0 %v120
  %v288 = vpop.f32.mrb[0].mxu0
  %v289 = vadd.f32 %v68, %v288
  %v290 = vpop.f32.mrb[0].mxu0
  %v291 = vpop.f32.mrb[0].mxu0
  %v292 = vadd.f32 %v68, %v291
  %v293 = vpop.f32.mrb[0].mxu0
  %294 = vmatprep.mubr.bf16.mxu0 %v123
  %295 = vmatmul.mubr.bf16.gmra.mrb[0].mxu0 %v122
  %v296 = vpop.f32.mrb[0].mxu0
  %v297 = vadd.f32 %v68, %v296
  %v298 = vpop.f32.mrb[0].mxu0
  %v299 = vpop.f32.mrb[0].mxu0
  %v300 = vadd.f32 %v68, %v299
  %v301 = vpop.f32.mrb[0].mxu0
  %302 = vmatprep.mubr.bf16.mxu0 %v125
  %303 = vmatmul.mubr.bf16.gmra.mrb[0].mxu0 %v124
  %v304 = vpop.f32.mrb[0].mxu0
  %v305 = vadd.f32 %v68, %v304
  %v306 = vpop.f32.mrb[0].mxu0
  %v307 = vpop.f32.mrb[0].mxu0
  %v308 = vadd.f32 %v68, %v307
  %v309 = vpop.f32.mrb[0].mxu0
  %310 = vmatprep.mubr.bf16.mxu0 %v127
  %311 = vmatmul.mubr.bf16.gmra.mrb[0].mxu0 %v126
  %v312 = vpop.f32.mrb[0].mxu0
  %v313 = vadd.f32 %v68, %v312
  %v314 = vpop.f32.mrb[0].mxu0
  %v315 = vpop.f32.mrb[0].mxu0
  %v316 = vadd.f32 %v68, %v315
  %v317 = vpop.f32.mrb[0].mxu0
  %318 = vmatprep.mubr.bf16.mxu0 %v129
  %319 = vmatmul.mubr.bf16.gmra.mrb[0].mxu0 %v128
  %v320 = vpop.f32.mrb[0].mxu0
  %v321 = vadd.f32 %v68, %v320
  %v322 = vpop.f32.mrb[0].mxu0
  %v323 = vpop.f32.mrb[0].mxu0
  %v324 = vadd.f32 %v68, %v323
  %v325 = vpop.f32.mrb[0].mxu0
  %326 = vmatprep.mubr.bf16.mxu0 %v131
  %327 = vmatmul.mubr.bf16.gmra.mrb[0].mxu0 %v130
  %v328 = vpop.f32.mrb[0].mxu0
  %v329 = vadd.f32 %v68, %v328
  %v330 = vpop.f32.mrb[0].mxu0
  %v331 = vpop.f32.mrb[0].mxu0
  %v332 = vadd.f32 %v68, %v331
  %v333 = vpop.f32.mrb[0].mxu0
  %334 = vmatprep.mubr.bf16.mxu0 %v133
  %335 = vmatmul.mubr.bf16.gmra.mrb[0].mxu0 %v132
  %v336 = vpop.f32.mrb[0].mxu0
  %v337 = vadd.f32 %v68, %v336
  %v338 = vpop.f32.mrb[0].mxu0
  %v339 = vpop.f32.mrb[0].mxu0
  %v340 = vadd.f32 %v68, %v339
  %v341 = vpop.f32.mrb[0].mxu0
  %342 = vdwg.mxu0
  %v343 = vmax.f32 %v281, 0.0
  %v344 = vmax.f32 %v284, 0.0
  %v345 = vmax.f32 %v289, 0.0
  %v346 = vmax.f32 %v292, 0.0
  %v347 = vmax.f32 %v297, 0.0
  %v348 = vmax.f32 %v300, 0.0
  %v349 = vmax.f32 %v305, 0.0
  %v350 = vmax.f32 %v308, 0.0
  %v351 = vmax.f32 %v313, 0.0
  %v352 = vmax.f32 %v316, 0.0
  %v353 = vmax.f32 %v321, 0.0
  %v354 = vmax.f32 %v324, 0.0
  %v355 = vmax.f32 %v329, 0.0
  %v356 = vmax.f32 %v332, 0.0
  %v357 = vmax.f32 %v337, 0.0
  %v358 = vmax.f32 %v340, 0.0
  %v359 = vpack.c.bf16 %v344, %v343
  %v360 = vpack.c.bf16 %v346, %v345
  %v361 = vpack.c.bf16 %v348, %v347
  %v362 = vpack.c.bf16 %v350, %v349
  %v363 = vpack.c.bf16 %v352, %v351
  %v364 = vpack.c.bf16 %v354, %v353
  %v365 = vpack.c.bf16 %v356, %v355
  %v366 = vpack.c.bf16 %v358, %v357
  %v375 = vunpack.c.l.b16 %v359
  %v376 = vunpack.c.h.b16 %v359
  %v377 = vunpack.c.l.b16 %v360
  %v378 = vunpack.c.h.b16 %v360
  %v379 = vunpack.c.l.b16 %v361
  %v380 = vunpack.c.h.b16 %v361
  %v381 = vunpack.c.l.b16 %v362
  %v382 = vunpack.c.h.b16 %v362
  %v383 = vunpack.c.l.b16 %v363
  %v384 = vunpack.c.h.b16 %v363
  %v385 = vunpack.c.l.b16 %v364
  %v386 = vunpack.c.h.b16 %v364
  %v387 = vunpack.c.l.b16 %v365
  %v388 = vunpack.c.h.b16 %v365
  %v389 = vunpack.c.l.b16 %v366
  %v390 = vunpack.c.h.b16 %v366
  %v391 = vpack.c.b16 %v375, %v375
  %v392 = vpack.c.b16 %v376, %v376
  %v393 = vpack.c.b16 %v377, %v377
  %v394 = vpack.c.b16 %v378, %v378
  %v395 = vpack.c.b16 %v379, %v379
  %v396 = vpack.c.b16 %v380, %v380
  %v397 = vpack.c.b16 %v381, %v381
  %v398 = vpack.c.b16 %v382, %v382
  %v399 = vpack.c.b16 %v383, %v383
  %v400 = vpack.c.b16 %v384, %v384
  %v401 = vpack.c.b16 %v385, %v385
  %v402 = vpack.c.b16 %v386, %v386
  %v403 = vpack.c.b16 %v387, %v387
  %v404 = vpack.c.b16 %v388, %v388
  %v405 = vpack.c.b16 %v389, %v389
  %v406 = vpack.c.b16 %v390, %v390
  %423 = vst [vmem:[%s3] sm:$0xf] %v391
  %424 = vst [vmem:[%s3 + $0x4] sm:$0xf] %v392
  %425 = vst [vmem:[%s3 + $0x8] sm:$0xf] %v393
  %426 = vst [vmem:[%s3 + $0xc] sm:$0xf] %v394
  %427 = vst [vmem:[%s3 + $0x10] sm:$0xf] %v395
  %428 = vst [vmem:[%s3 + $0x14] sm:$0xf] %v396
  %429 = vst [vmem:[%s3 + $0x18] sm:$0xf] %v397
  %430 = vst [vmem:[%s3 + $0x1c] sm:$0xf] %v398
  %431 = vst [vmem:[%s3 + $0x20] sm:$0xf] %v399
  %432 = vst [vmem:[%s3 + $0x24] sm:$0xf] %v400
  %433 = vst [vmem:[%s3 + $0x28] sm:$0xf] %v401
  %434 = vst [vmem:[%s3 + $0x2c] sm:$0xf] %v402
  %435 = vst [vmem:[%s3 + $0x30] sm:$0xf] %v403
  %436 = vst [vmem:[%s3 + $0x34] sm:$0xf] %v404
  %437 = vst [vmem:[%s3 + $0x38] sm:$0xf] %v405
  %438 = vst [vmem:[%s3 + $0x3c] sm:$0xf] %v406
  // Predicated region
  $region14: #{_forward_all.4} parent=0 // pred_check
    _
  $region15: #{_forward_all.4} parent=0 // pred_check_branch
    %440 = sbr.rel (0) target = $region17
  $region16: #{_forward_all.4} parent=0 // pred_region
    _
  $region17: #{_forward_all.4} parent=0 // pred_fallthru
    _
  // Predicated region
  $region18: #{_forward_all.4} parent=0 // pred_check
    _
  $region19: #{_forward_all.4} parent=0 // pred_check_branch
    %442 = sbr.rel (0) target = $region21
  $region20: #{_forward_all.4} parent=0 // pred_region
    _
  $region21: #{_forward_all.4} parent=0 // pred_fallthru
    _

// kernel: _forward_all.5
$region0: #{_forward_all.5}
  #allocation0 [shape = 'u32[]', space=smem, size = 0x4, offset = 0x4, fixed_abs, tag = 'smem constant byte address 0x4 - core index']
  #allocation1 [shape = 'u32[144,128]{1,0:T(1,128)}', space=vmem, size = 0x12000, scoped, tag = 'internal scratch']
  %s0 = inlined_call_operand.vmem [shape: bf16[32,384], index: 0, kind: input, shape index: {}]
  %s1 = inlined_call_operand.vmem [shape: bf16[384,128], index: 1, kind: input, shape index: {}]
  %s2 = inlined_call_operand.vmem [shape: f32[1,128], index: 2, kind: input, shape index: {}]
  %s3 = inlined_call_operand.vmem [shape: bf16[32,128], index: 3, kind: output, shape index: {}]
  %s4 = sld [smem:[#allocation0]]
  $region22: #{_forward_all.5} parent=0
    _
  %s6 = ssub.s32 1, %s4
  %s7 = scalar_select 0, %s6, %s4
  // Predicated region
  $region2: #{_forward_all.5} parent=0 // pred_check
    _
  $region3: #{_forward_all.5} parent=0 // pred_check_branch
    %9 = sbr.rel (0) target = $region5
  $region4: #{_forward_all.5} parent=0 // pred_region
    _
  $region5: #{_forward_all.5} parent=0 // pred_fallthru
    _
  // Predicated region
  $region6: #{_forward_all.5} parent=0 // pred_check
    _
  $region7: #{_forward_all.5} parent=0 // pred_check_branch
    %11 = sbr.rel (0) target = $region9
  $region8: #{_forward_all.5} parent=0 // pred_region
    _
  $region9: #{_forward_all.5} parent=0 // pred_fallthru
    _
  // Predicated region
  $region10: #{_forward_all.5} parent=0 // pred_check
    _
  $region11: #{_forward_all.5} parent=0 // pred_check_branch
    %13 = sbr.rel (0) target = $region13
  $region12: #{_forward_all.5} parent=0 // pred_region
    _
  $region13: #{_forward_all.5} parent=0 // pred_fallthru
    _
  %v15 = vld [vmem:[%s0] sm:$0xff]
  %v16 = vld [vmem:[%s0 + $0x8] sm:$0xf]
  %v17 = vld [vmem:[%s0 + $0xc] sm:$0xff]
  %v18 = vld [vmem:[%s0 + $0x14] sm:$0xf]
  %v19 = vld [vmem:[%s0 + $0x18] sm:$0xff]
  %v20 = vld [vmem:[%s0 + $0x20] sm:$0xf]
  %v21 = vld [vmem:[%s0 + $0x24] sm:$0xff]
  %v22 = vld [vmem:[%s0 + $0x2c] sm:$0xf]
  %v23 = vld [vmem:[%s1] sm:$0xf]
  %v24 = vld [vmem:[%s1 + $0x4] sm:$0xf]
  %v25 = vld [vmem:[%s1 + $0x8] sm:$0xf]
  %v26 = vld [vmem:[%s1 + $0xc] sm:$0xf]
  %v27 = vld [vmem:[%s1 + $0x10] sm:$0xf]
  %v28 = vld [vmem:[%s1 + $0x14] sm:$0xf]
  %v29 = vld [vmem:[%s1 + $0x18] sm:$0xf]
  %v30 = vld [vmem:[%s1 + $0x1c] sm:$0xf]
  %v31 = vld [vmem:[%s1 + $0x20] sm:$0xf]
  %v32 = vld [vmem:[%s1 + $0x24] sm:$0xf]
  %v33 = vld [vmem:[%s1 + $0x28] sm:$0xf]
  %v34 = vld [vmem:[%s1 + $0x2c] sm:$0xf]
  %v35 = vld [vmem:[%s1 + $0x30] sm:$0xf]
  %v36 = vld [vmem:[%s1 + $0x34] sm:$0xf]
  %v37 = vld [vmem:[%s1 + $0x38] sm:$0xf]
  %v38 = vld [vmem:[%s1 + $0x3c] sm:$0xf]
  %v39 = vld [vmem:[%s1 + $0x40] sm:$0xf]
  %v40 = vld [vmem:[%s1 + $0x44] sm:$0xf]
  %v41 = vld [vmem:[%s1 + $0x48] sm:$0xf]
  %v42 = vld [vmem:[%s1 + $0x4c] sm:$0xf]
  %v43 = vld [vmem:[%s1 + $0x50] sm:$0xf]
  %v44 = vld [vmem:[%s1 + $0x54] sm:$0xf]
  %v45 = vld [vmem:[%s1 + $0x58] sm:$0xf]
  %v46 = vld [vmem:[%s1 + $0x5c] sm:$0xf]
  %v47 = vld [vmem:[%s1 + $0x60] sm:$0xf]
  %v48 = vld [vmem:[%s1 + $0x64] sm:$0xf]
  %v49 = vld [vmem:[%s1 + $0x68] sm:$0xf]
  %v50 = vld [vmem:[%s1 + $0x6c] sm:$0xf]
  %v51 = vld [vmem:[%s1 + $0x70] sm:$0xf]
  %v52 = vld [vmem:[%s1 + $0x74] sm:$0xf]
  %v53 = vld [vmem:[%s1 + $0x78] sm:$0xf]
  %v54 = vld [vmem:[%s1 + $0x7c] sm:$0xf]
  %v55 = vld [vmem:[%s1 + $0x80] sm:$0xf]
  %v56 = vld [vmem:[%s1 + $0x84] sm:$0xf]
  %v57 = vld [vmem:[%s1 + $0x88] sm:$0xf]
  %v58 = vld [vmem:[%s1 + $0x8c] sm:$0xf]
  %v59 = vld [vmem:[%s1 + $0x90] sm:$0xf]
  %v60 = vld [vmem:[%s1 + $0x94] sm:$0xf]
  %v61 = vld [vmem:[%s1 + $0x98] sm:$0xf]
  %v62 = vld [vmem:[%s1 + $0x9c] sm:$0xf]
  %v63 = vld [vmem:[%s1 + $0xa0] sm:$0xf]
  %v64 = vld [vmem:[%s1 + $0xa4] sm:$0xf]
  %v65 = vld [vmem:[%s1 + $0xa8] sm:$0xf]
  %v66 = vld [vmem:[%s1 + $0xac] sm:$0xf]
  %v67 = vld [vmem:[%s1 + $0xb0] sm:$0xf]
  %v68 = vld [vmem:[%s1 + $0xb4] sm:$0xf]
  %v69 = vld [vmem:[%s1 + $0xb8] sm:$0xf]
  %v70 = vld [vmem:[%s1 + $0xbc] sm:$0xf]
  %v71 = vld [vmem:[%s2] sm:$0x1]
  %v73 = vlaneseq
  %v74 = vshrl.u32 %v73, 7
  %v75 = vsub.s32 0, %v74
  %v76 = vrot.slane %v71, %v75
  %v86 = vunpack.c.l.b16 %v15
  %v87 = vunpack.c.h.b16 %v15
  %v88 = vunpack.c.l.b16 %v16
  %v89 = vunpack.c.l.b16 %v17
  %v90 = vunpack.c.h.b16 %v17
  %v91 = vunpack.c.l.b16 %v18
  %v92 = vunpack.c.l.b16 %v19
  %v93 = vunpack.c.h.b16 %v19
  %v94 = vunpack.c.l.b16 %v20
  %v95 = vunpack.c.l.b16 %v21
  %v96 = vunpack.c.h.b16 %v21
  %v97 = vunpack.c.l.b16 %v22
  %v98 = vpack.c.b16 %v89, %v86
  %v99 = vpack.c.b16 %v90, %v87
  %v100 = vpack.c.b16 %v91, %v88
  %v101 = vpack.c.b16 %v95, %v92
  %v102 = vpack.c.b16 %v96, %v93
  %v103 = vpack.c.b16 %v97, %v94
  %v158 = vunpack.c.l.b16 %v23
  %v159 = vunpack.c.l.b16 %v24
  %v160 = vunpack.c.l.b16 %v25
  %v161 = vunpack.c.l.b16 %v26
  %v162 = vunpack.c.l.b16 %v27
  %v163 = vunpack.c.l.b16 %v28
  %v164 = vunpack.c.l.b16 %v29
  %v165 = vunpack.c.l.b16 %v30
  %v166 = vunpack.c.l.b16 %v31
  %v167 = vunpack.c.l.b16 %v32
  %v168 = vunpack.c.l.b16 %v33
  %v169 = vunpack.c.l.b16 %v34
  %v170 = vunpack.c.l.b16 %v35
  %v171 = vunpack.c.l.b16 %v36
  %v172 = vunpack.c.l.b16 %v37
  %v173 = vunpack.c.l.b16 %v38
  %v174 = vunpack.c.l.b16 %v39
  %v175 = vunpack.c.l.b16 %v40
  %v176 = vunpack.c.l.b16 %v41
  %v177 = vunpack.c.l.b16 %v42
  %v178 = vunpack.c.l.b16 %v43
  %v179 = vunpack.c.l.b16 %v44
  %v180 = vunpack.c.l.b16 %v45
  %v181 = vunpack.c.l.b16 %v46
  %v182 = vunpack.c.l.b16 %v47
  %v183 = vunpack.c.l.b16 %v48
  %v184 = vunpack.c.l.b16 %v49
  %v185 = vunpack.c.l.b16 %v50
  %v186 = vunpack.c.l.b16 %v51
  %v187 = vunpack.c.l.b16 %v52
  %v188 = vunpack.c.l.b16 %v53
  %v189 = vunpack.c.l.b16 %v54
  %v190 = vunpack.c.l.b16 %v55
  %v191 = vunpack.c.l.b16 %v56
  %v192 = vunpack.c.l.b16 %v57
  %v193 = vunpack.c.l.b16 %v58
  %v194 = vunpack.c.l.b16 %v59
  %v195 = vunpack.c.l.b16 %v60
  %v196 = vunpack.c.l.b16 %v61
  %v197 = vunpack.c.l.b16 %v62
  %v198 = vunpack.c.l.b16 %v63
  %v199 = vunpack.c.l.b16 %v64
  %v200 = vunpack.c.l.b16 %v65
  %v201 = vunpack.c.l.b16 %v66
  %v202 = vunpack.c.l.b16 %v67
  %v203 = vunpack.c.l.b16 %v68
  %v204 = vunpack.c.l.b16 %v69
  %v205 = vunpack.c.l.b16 %v70
  %v206 = vpack.c.b16 %v159, %v158
  %v207 = vpack.c.b16 %v161, %v160
  %v208 = vpack.c.b16 %v163, %v162
  %v209 = vpack.c.b16 %v165, %v164
  %v210 = vpack.c.b16 %v167, %v166
  %v211 = vpack.c.b16 %v169, %v168
  %v212 = vpack.c.b16 %v171, %v170
  %v213 = vpack.c.b16 %v173, %v172
  %v214 = vpack.c.b16 %v175, %v174
  %v215 = vpack.c.b16 %v177, %v176
  %v216 = vpack.c.b16 %v179, %v178
  %v217 = vpack.c.b16 %v181, %v180
  %v218 = vpack.c.b16 %v183, %v182
  %v219 = vpack.c.b16 %v185, %v184
  %v220 = vpack.c.b16 %v187, %v186
  %v221 = vpack.c.b16 %v189, %v188
  %v222 = vpack.c.b16 %v191, %v190
  %v223 = vpack.c.b16 %v193, %v192
  %v224 = vpack.c.b16 %v195, %v194
  %v225 = vpack.c.b16 %v197, %v196
  %v226 = vpack.c.b16 %v199, %v198
  %v227 = vpack.c.b16 %v201, %v200
  %v228 = vpack.c.b16 %v203, %v202
  %v229 = vpack.c.b16 %v205, %v204
  %254 = vmatprep.subr.bf16.mxu0 0
  %255 = vmatpush1.bf16.msra.mxu0 %v206
  %256 = vmatprep.subr.bf16.mxu0 0
  %257 = vmatpush1.bf16.msra.mxu0 %v207
  %258 = vmatprep.subr.bf16.mxu0 0
  %259 = vmatpush1.bf16.msra.mxu0 %v208
  %260 = vmatprep.subr.bf16.mxu0 0
  %261 = vmatpush1.bf16.msra.mxu0 %v209
  %262 = vmatprep.subr.bf16.mxu0 0
  %263 = vmatpush1.bf16.msra.mxu0 %v210
  %264 = vmatprep.subr.bf16.mxu0 0
  %265 = vmatpush1.bf16.msra.mxu0 %v211
  %266 = vmatprep.subr.bf16.mxu0 0
  %267 = vmatpush1.bf16.msra.mxu0 %v212
  %268 = vmatprep.subr.bf16.mxu0 0
  %269 = vmatpush1.bf16.msra.mxu0 %v213
  %270 = vmatprep.subr.bf16.mxu0 0
  %271 = vmatpush1.bf16.msra.mxu0 %v214
  %272 = vmatprep.subr.bf16.mxu0 0
  %273 = vmatpush1.bf16.msra.mxu0 %v215
  %274 = vmatprep.subr.bf16.mxu0 0
  %275 = vmatpush1.bf16.msra.mxu0 %v216
  %276 = vmatprep.subr.bf16.mxu0 0
  %277 = vmatpush1.bf16.msra.mxu0 %v217
  %278 = vmatprep.subr.bf16.mxu0 0
  %279 = vmatpush1.bf16.msra.mxu0 %v218
  %280 = vmatprep.subr.bf16.mxu0 0
  %281 = vmatpush1.bf16.msra.mxu0 %v219
  %282 = vmatprep.subr.bf16.mxu0 0
  %283 = vmatpush1.bf16.msra.mxu0 %v220
  %284 = vmatprep.subr.bf16.mxu0 0
  %285 = vmatpush1.bf16.msra.mxu0 %v221
  %286 = vmatprep.mubr.bf16.mxu0 %v99
  %287 = vmatmul.mubr.bf16.gmra.mrb[0].mxu0 %v98
  %v288 = vpop.f32.mrb[0].mxu0
  %v289 = vadd.f32 %v76, %v288
  %v290 = vpop.f32.mrb[0].mxu0
  %v291 = vpop.f32.mrb[0].mxu0
  %v292 = vadd.f32 %v76, %v291
  %v293 = vpop.f32.mrb[0].mxu0
  %294 = vmatprep.mubr.bf16.mxu0 %v102
  %295 = vmatmul.mubr.bf16.gmra.mrb[0].mxu0 %v101
  %v296 = vpop.f32.mrb[0].mxu0
  %v297 = vadd.f32 %v76, %v296
  %v298 = vpop.f32.mrb[0].mxu0
  %v299 = vpop.f32.mrb[0].mxu0
  %v300 = vadd.f32 %v76, %v299
  %v301 = vpop.f32.mrb[0].mxu0
  %302 = vdwg.mxu0
  %303 = vmatprep.subr.bf16.mxu0 0
  %304 = vmatpush1.bf16.msra.mxu0 %v222
  %305 = vmatprep.subr.bf16.mxu0 0
  %306 = vmatpush1.bf16.msra.mxu0 %v223
  %307 = vmatprep.subr.bf16.mxu0 0
  %308 = vmatpush1.bf16.msra.mxu0 %v224
  %309 = vmatprep.subr.bf16.mxu0 0
  %310 = vmatpush1.bf16.msra.mxu0 %v225
  %311 = vmatprep.subr.bf16.mxu0 0
  %312 = vmatpush1.bf16.msra.mxu0 %v226
  %313 = vmatprep.subr.bf16.mxu0 0
  %314 = vmatpush1.bf16.msra.mxu0 %v227
  %315 = vmatprep.subr.bf16.mxu0 0
  %316 = vmatpush1.bf16.msra.mxu0 %v228
  %317 = vmatprep.subr.bf16.mxu0 0
  %318 = vmatpush1.bf16.msra.mxu0 %v229
  %319 = vmatprep.subr.bf16.mxu0 0
  %320 = vmatpush1.bf16.msra.mxu0 0
  %321 = vmatprep.subr.bf16.mxu0 0
  %322 = vmatpush1.bf16.msra.mxu0 0
  %323 = vmatprep.subr.bf16.mxu0 0
  %324 = vmatpush1.bf16.msra.mxu0 0
  %325 = vmatprep.subr.bf16.mxu0 0
  %326 = vmatpush1.bf16.msra.mxu0 0
  %327 = vmatprep.subr.bf16.mxu0 0
  %328 = vmatpush1.bf16.msra.mxu0 0
  %329 = vmatprep.subr.bf16.mxu0 0
  %330 = vmatpush1.bf16.msra.mxu0 0
  %331 = vmatprep.subr.bf16.mxu0 0
  %332 = vmatpush1.bf16.msra.mxu0 0
  %333 = vmatprep.subr.bf16.mxu0 0
  %334 = vmatpush1.bf16.msra.mxu0 0
  %335 = vmatprep.mubr.bf16.mxu0 0
  %336 = vmatmul.mubr.bf16.gmra.mrb[0].mxu0 %v100
  %v337 = vpop.f32.mrb[0].mxu0
  %v338 = vadd.f32 %v289, %v337
  %v339 = vpop.f32.mrb[0].mxu0
  %v340 = vpop.f32.mrb[0].mxu0
  %v341 = vadd.f32 %v292, %v340
  %v342 = vpop.f32.mrb[0].mxu0
  %343 = vmatprep.mubr.bf16.mxu0 0
  %344 = vmatmul.mubr.bf16.gmra.mrb[0].mxu0 %v103
  %v345 = vpop.f32.mrb[0].mxu0
  %v346 = vadd.f32 %v297, %v345
  %v347 = vpop.f32.mrb[0].mxu0
  %v348 = vpop.f32.mrb[0].mxu0
  %v349 = vadd.f32 %v300, %v348
  %v350 = vpop.f32.mrb[0].mxu0
  %351 = vdwg.mxu0
  %v352 = vmax.f32 %v338, 0.0
  %v353 = vmax.f32 %v341, 0.0
  %v354 = vmax.f32 %v346, 0.0
  %v355 = vmax.f32 %v349, 0.0
  %v356 = vpack.c.bf16 %v353, %v352
  %v357 = vpack.c.bf16 %v355, %v354
  %v360 = vunpack.c.l.b16 %v356
  %v361 = vunpack.c.h.b16 %v356
  %v362 = vunpack.c.l.b16 %v357
  %v363 = vunpack.c.h.b16 %v357
  %v364 = vpack.c.b16 %v360, %v360
  %v365 = vpack.c.b16 %v361, %v361
  %v366 = vpack.c.b16 %v362, %v362
  %v367 = vpack.c.b16 %v363, %v363
  %372 = vst [vmem:[%s3] sm:$0xf] %v364
  %373 = vst [vmem:[%s3 + $0x4] sm:$0xf] %v365
  %374 = vst [vmem:[%s3 + $0x8] sm:$0xf] %v366
  %375 = vst [vmem:[%s3 + $0xc] sm:$0xf] %v367
  // Predicated region
  $region14: #{_forward_all.5} parent=0 // pred_check
    _
  $region15: #{_forward_all.5} parent=0 // pred_check_branch
    %377 = sbr.rel (0) target = $region17
  $region16: #{_forward_all.5} parent=0 // pred_region
    _
  $region17: #{_forward_all.5} parent=0 // pred_fallthru
    _
  // Predicated region
  $region18: #{_forward_all.5} parent=0 // pred_check
    _
  $region19: #{_forward_all.5} parent=0 // pred_check_branch
    %379 = sbr.rel (0) target = $region21
  $region20: #{_forward_all.5} parent=0 // pred_region
    _
  $region21: #{_forward_all.5} parent=0 // pred_fallthru
    _

</llo_original>
